<compile_context>
chip_gen: v5e
topology: v5e:2x2
jax: 0.10.0
libtpu: 0.0.40
codegen_flags: <defaults>
</compile_context>

<pallas_src>
import math

import jax
import jax.numpy as jnp
from jax import lax
from jax.experimental import pallas as pl
from jax.experimental.pallas import tpu as pltpu


def _make_kernel(H, dh, M, L, D, B_blk):
    inv_sqrt_dh = 1.0 / math.sqrt(dh)
    BL = B_blk * L
    bf16 = jnp.bfloat16
    f32 = jnp.float32

    def kernel(seq_len_ref,                    # SMEM scalar-prefetch: (B,) int32
               x_ref,                          # (BL, D) f32   -- B_blk sequences, row-major
               whid_ref,                       # (D, D)  bf16
               wqkv_ref,                       # (D, 3D) bf16  -- [Wq | Wk | Wv]
               wout_ref,                       # (D, D)  bf16
               kmem_ref,                       # (H, dh, M) bf16 (pre-transposed)
               vmem_ref,                       # (H, M, dh) bf16
               affine_ref,                     # (3, D) f32    -- [bhid; ln_gamma; ln_beta]
               out_ref):                       # (BL, D) f32
        b0 = pl.program_id(0) * B_blk

        x = x_ref[...]                                             # (BL, D) f32

        # hid = relu(x @ Whid + bhid)        (bf16 operands, f32 MXU accumulation)
        hid = jnp.maximum(
            jnp.dot(x.astype(bf16), whid_ref[...], preferred_element_type=f32)
            + affine_ref[0:1, :], 0.0)                             # (BL, D) f32

        # fused Q/K/V projection (no bias)
        qkv = jnp.dot(hid.astype(bf16), wqkv_ref[...],
                      preferred_element_type=f32)                  # (BL, 3D) f32

        # key-position validity per sequence in the block (queries are never masked,
        # memory keys are never masked -> softmax denominator is always > 0).
        kidx = lax.broadcasted_iota(jnp.int32, (B_blk, L, L), 2)
        bidx = lax.broadcasted_iota(jnp.int32, (B_blk, L, L), 0)
        thr = jnp.zeros((B_blk, L, L), jnp.int32)
        for i in range(B_blk):                                     # small, static unroll
            thr = jnp.where(bidx == i, seq_len_ref[b0 + i], thr)
        valid = kidx < thr                                         # (B_blk, L, L)

        # Per-head attention, batched over the B_blk sequences.
        ctx_heads = []
        for h in range(H):
            q2 = qkv[:, h * dh:(h + 1) * dh]                       # (BL, dh) f32
            k2 = qkv[:, D + h * dh:D + (h + 1) * dh]
            v2 = qkv[:, 2 * D + h * dh:2 * D + (h + 1) * dh]
            qh = q2.reshape(B_blk, L, dh).astype(bf16)             # (B, L, dh)
            kh = k2.reshape(B_blk, L, dh).astype(bf16)
            vh = v2.reshape(B_blk, L, dh).astype(bf16)

            # scores against sequence keys (batched 3D) and shared memory keys (2D).
            s_seq = jnp.einsum('bqd,bkd->bqk', qh, kh,
                               preferred_element_type=f32) * inv_sqrt_dh     # (B,L,L)
            s_mem = (jnp.dot(q2.astype(bf16), kmem_ref[h],
                             preferred_element_type=f32)
                     * inv_sqrt_dh).reshape(B_blk, L, M)                      # (B,L,M)
            s_seq = jnp.where(valid, s_seq, -jnp.inf)

            # joint softmax over [seq keys | memory keys], statistics in f32.
            m = jnp.maximum(jnp.max(s_seq, axis=-1, keepdims=True),
                            jnp.max(s_mem, axis=-1, keepdims=True))          # (B,L,1)
            e_seq = jnp.exp(s_seq - m)                                        # exp(-inf)=0
            e_mem = jnp.exp(s_mem - m)
            inv = pl.reciprocal(jnp.sum(e_seq, axis=-1, keepdims=True)
                                + jnp.sum(e_mem, axis=-1, keepdims=True),
                                approx=True)
            p_seq = (e_seq * inv).astype(bf16)                                # (B,L,L)
            p_mem = (e_mem * inv).reshape(BL, M).astype(bf16)                 # (BL,M)

            ctx_h = (jnp.einsum('bqk,bkd->bqd', p_seq, vh,
                                preferred_element_type=f32).reshape(BL, dh)
                     + jnp.dot(p_mem, vmem_ref[h],
                               preferred_element_type=f32))                   # (BL,dh) f32
            ctx_heads.append(ctx_h)

        ctx = jnp.concatenate(ctx_heads, axis=1)                              # (BL, D) f32
        attn_out = jnp.dot(ctx.astype(bf16), wout_ref[...],
                           preferred_element_type=f32)                        # (BL, D) f32

        # residual + LayerNorm (eps=1e-5, biased variance, all f32) + affine
        y = x + attn_out
        mu = jnp.mean(y, axis=-1, keepdims=True)
        var = jnp.mean((y - mu) * (y - mu), axis=-1, keepdims=True)
        y = (y - mu) * lax.rsqrt(var + 1e-5)
        out_ref[...] = y * affine_ref[1:2, :] + affine_ref[2:3, :]

    return kernel


def self_attn_mem_layer(x, seq_len, params, head_num, memory_num, batch_block=None):
    """x: [B, L, D] f32, seq_len: [B] int32 -> [B, L, D] f32.

    Linear weights in `params` are pre-transposed so the kernel computes y = x @ W (+ b),
    matching PyTorch's y = x @ W^T + b.
    """
    B, L, D = x.shape
    H, M = head_num, memory_num
    assert D % H == 0
    dh = D // H

    # pick how many whole sequences each grid step processes
    if batch_block is None:
        batch_block = next(c for c in (min(B, 8), 8, 4, 2, 1) if B % c == 0)
    if (batch_block * L) % 8 != 0:          # keep the (8,128) block constraint satisfied
        batch_block = B
    assert B % batch_block == 0
    n_blk = B // batch_block
    BL = batch_block * L

    bf16 = jnp.bfloat16
    # --- weight packing / layout prep (all outside the kernel) ---
    whid = params["whid"].astype(bf16)                                       # (D, D)
    wqkv = jnp.concatenate([params["wq"], params["wk"], params["wv"]],
                           axis=1).astype(bf16)                              # (D, 3D)
    wout = params["wout"].astype(bf16)                                       # (D, D)
    kmem = jnp.transpose(params["kmem"], (0, 2, 1)).astype(bf16)             # (H, dh, M)
    vmem = params["vmem"].astype(bf16)                                       # (H, M, dh)
    affine = jnp.concatenate([params["bhid"], params["gamma"],
                              params["beta"]], axis=0).astype(jnp.float32)   # (3, D)

    x2 = x.reshape(B * L, D).astype(jnp.float32)
    seq_len = seq_len.astype(jnp.int32)

    kernel = _make_kernel(H, dh, M, L, D, batch_block)

    def const_spec(shape):
        return pl.BlockSpec(shape, lambda *_args, _n=len(shape): (0,) * _n)

    grid_spec = pltpu.PrefetchScalarGridSpec(
        num_scalar_prefetch=1,
        grid=(n_blk,),
        in_specs=[
            pl.BlockSpec((BL, D), lambda b, sl: (b, 0)),      # x (batch_block sequences)
            const_spec((D, D)),                               # Whid^T
            const_spec((D, 3 * D)),                           # [Wq | Wk | Wv]^T
            const_spec((D, D)),                               # Wout^T
            const_spec((H, dh, M)),                           # key memory (pre-transposed)
            const_spec((H, M, dh)),                           # value memory
            const_spec((3, D)),                               # [bhid; gamma; beta]
        ],
        out_specs=pl.BlockSpec((BL, D), lambda b, sl: (b, 0)),
    )

    out = pl.pallas_call(
        kernel,
        grid_spec=grid_spec,
        out_shape=jax.ShapeDtypeStruct((B * L, D), jnp.float32),
        compiler_params=pltpu.CompilerParams(
            dimension_semantics=("parallel",)),   # v7x: shard batch blocks across both TCs
    )(seq_len, x2, whid, wqkv, wout, kmem, vmem, affine)
    return out.reshape(B, L, D)


def reference(x, seq_len, p, H, M, dot_dtype=jnp.float32):
    """Pure-JAX reference mirroring the PyTorch forward (dropout=0).

    `dot_dtype` selects the matmul-operand precision so the kernel's bf16-operand /
    f32-accumulate policy can be checked tightly (bf16) as well as against the exact
    f32 module semantics (f32).
    """
    B, L, D = x.shape
    dh = D // H

    def mm(a, b):
        return jnp.matmul(a.astype(dot_dtype), b.astype(dot_dtype),
                          preferred_element_type=jnp.float32)

    hid = jax.nn.relu(mm(x, p["whid"]) + p["bhid"][0])
    q, k, v = mm(hid, p["wq"]), mm(hid, p["wk"]), mm(hid, p["wv"])

    def split(t):
        return t.reshape(B, L, H, dh).transpose(0, 2, 1, 3)

    qh, kh, vh = split(q), split(k), split(v)
    kh = jnp.concatenate([kh, jnp.broadcast_to(p["kmem"][None], (B, H, M, dh))], axis=2)
    vh = jnp.concatenate([vh, jnp.broadcast_to(p["vmem"][None], (B, H, M, dh))], axis=2)
    s = jnp.einsum("bhqd,bhkd->bhqk", qh.astype(dot_dtype), kh.astype(dot_dtype),
                   preferred_element_type=jnp.float32) / math.sqrt(dh)
    kidx = jnp.arange(L + M)
    key_ok = (kidx[None, :] < seq_len[:, None]) | (kidx[None, :] >= L)       # (B, L+M)
    s = jnp.where(key_ok[:, None, None, :], s, -jnp.inf)
    attn = jax.nn.softmax(s, axis=-1)
    ctx = jnp.einsum("bhqk,bhkd->bhqd", attn.astype(dot_dtype), vh.astype(dot_dtype),
                     preferred_element_type=jnp.float32)
    ctx = ctx.transpose(0, 2, 1, 3).reshape(B, L, D)
    y = x + mm(ctx, p["wout"])
    mu = y.mean(-1, keepdims=True)
    var = ((y - mu) ** 2).mean(-1, keepdims=True)
    y = (y - mu) / jnp.sqrt(var + 1e-5)
    return y * p["gamma"][0] + p["beta"][0]


if __name__ == "__main__":
    # Small shapes consistent with the module.
    B, L, D = 2, 8, 32
    H, M = 4, 4
    dh = D // H

    key = jax.random.PRNGKey(0)
    ks = jax.random.split(key, 12)
    scale = 1.0 / math.sqrt(D)
    params = {
        "whid": jax.random.normal(ks[0], (D, D), jnp.float32) * scale,   # already transposed
        "bhid": jax.random.normal(ks[1], (1, D), jnp.float32) * 0.1,
        "wq":   jax.random.normal(ks[2], (D, D), jnp.float32) * scale,
        "wk":   jax.random.normal(ks[3], (D, D), jnp.float32) * scale,
        "wv":   jax.random.normal(ks[4], (D, D), jnp.float32) * scale,
        "wout": jax.random.normal(ks[5], (D, D), jnp.float32) * scale,
        "kmem": jax.random.normal(ks[6], (H, M, dh), jnp.float32) * (1.0 / math.sqrt(dh)),
        "vmem": jax.random.normal(ks[7], (H, M, dh), jnp.float32) * (1.0 / math.sqrt(dh)),
        "gamma": 1.0 + 0.1 * jax.random.normal(ks[8], (1, D), jnp.float32),
        "beta": 0.1 * jax.random.normal(ks[9], (1, D), jnp.float32),
    }

    x = jax.random.normal(ks[10], (B, L, D), jnp.float32)
    seq_len = jnp.array([8, 5], dtype=jnp.int32)   # second sequence is padded

    # TODO(synk): dropout is p=0.0 in this synthetic setup, so it is an identity and is omitted.
    out = self_attn_mem_layer(x, seq_len, params, head_num=H, memory_num=M)
    out = jax.block_until_ready(out)
    assert out.shape == (B, L, D)
    assert bool(jnp.all(jnp.isfinite(out)))

    # Tight check against a reference using the same bf16-operand / f32-accumulate policy.
    ref_bf16 = reference(x, seq_len, params, H, M, dot_dtype=jnp.bfloat16)
    err_b = float(jnp.max(jnp.abs(out - ref_bf16)))
    assert jnp.allclose(out, ref_bf16, atol=2e-2, rtol=2e-2), err_b

    # Loose sanity check against the exact f32 module semantics (difference = bf16 rounding).
    ref_f32 = reference(x, seq_len, params, H, M, dot_dtype=jnp.float32)
    err_f = float(jnp.max(jnp.abs(out - ref_f32)))
    assert jnp.allclose(out, ref_f32, atol=1e-1, rtol=1e-1), err_f

    print("KERNEL_OK")
</pallas_src>

<mosaic_0001>
module attributes {stable_mosaic.version = 11 : i64} {
  func.func @kernel(%arg0: i32, %arg1: memref<2xi32, #tpu.memory_space<smem>>, %arg2: memref<16x32xf32, #tpu.memory_space<vmem>>, %arg3: memref<32x32xbf16, #tpu.memory_space<vmem>>, %arg4: memref<32x96xbf16, #tpu.memory_space<vmem>>, %arg5: memref<32x32xbf16, #tpu.memory_space<vmem>>, %arg6: memref<4x8x4xbf16, #tpu.memory_space<vmem>>, %arg7: memref<4x4x8xbf16, #tpu.memory_space<vmem>>, %arg8: memref<3x32xf32, #tpu.memory_space<vmem>>, %arg9: memref<16x32xf32, #tpu.memory_space<vmem>>) attributes {dimension_semantics = [#tpu.dimension_semantics<parallel>], iteration_bounds = array<i64: 1>, scalar_prefetch = 1 : i64, scratch_operands = 0 : i64, tpu.core_type = #tpu.core_type<tc>, window_params = [{transform_indices = @transform_0, window_bounds = array<i64: 16, 32>}, {pipeline_mode = #tpu.pipeline_mode<synchronous>, transform_indices = @transform_1, window_bounds = array<i64: 32, 32>}, {pipeline_mode = #tpu.pipeline_mode<synchronous>, transform_indices = @transform_2, window_bounds = array<i64: 32, 96>}, {pipeline_mode = #tpu.pipeline_mode<synchronous>, transform_indices = @transform_3, window_bounds = array<i64: 32, 32>}, {pipeline_mode = #tpu.pipeline_mode<synchronous>, transform_indices = @transform_4, window_bounds = array<i64: 4, 8, 4>}, {pipeline_mode = #tpu.pipeline_mode<synchronous>, transform_indices = @transform_5, window_bounds = array<i64: 4, 4, 8>}, {pipeline_mode = #tpu.pipeline_mode<synchronous>, transform_indices = @transform_6, window_bounds = array<i64: 3, 32>}, {transform_indices = @transform_7, window_bounds = array<i64: 16, 32>}]} {
    %c2_i32 = arith.constant 2 : i32
    %0 = arith.muli %arg0, %c2_i32 : i32
    %c0 = arith.constant 0 : index
    %c0_0 = arith.constant 0 : index
    %1 = vector.load %arg2[%c0, %c0_0] : memref<16x32xf32, #tpu.memory_space<vmem>>, vector<16x32xf32>
    %2 = arith.truncf %1 : vector<16x32xf32> to vector<16x32xbf16>
    %c0_1 = arith.constant 0 : index
    %c0_2 = arith.constant 0 : index
    %3 = vector.load %arg3[%c0_1, %c0_2] : memref<32x32xbf16, #tpu.memory_space<vmem>>, vector<32x32xbf16>
    %cst = arith.constant dense<0.000000e+00> : vector<16x32xf32>
    %4 = tpu.matmul %2, %3, %cst {dimension_numbers = #tpu.dot_dimension_numbers<[1], [0], [0], [1], [0, 0, 1, 1], [], []>} : vector<16x32xbf16>, vector<32x32xbf16>, vector<16x32xf32> -> vector<16x32xf32>
    %c0_3 = arith.constant 0 : index
    %c0_4 = arith.constant 0 : index
    %5 = vector.load %arg8[%c0_3, %c0_4] : memref<3x32xf32, #tpu.memory_space<vmem>>, vector<1x32xf32>
    %6 = vector.broadcast %5 : vector<1x32xf32> to vector<16x32xf32>
    %7 = arith.addf %4, %6 : vector<16x32xf32>
    %cst_5 = arith.constant 0.000000e+00 : f32
    %8 = vector.broadcast %cst_5 : f32 to vector<16x32xf32>
    %9 = arith.maximumf %7, %8 : vector<16x32xf32>
    %10 = arith.truncf %9 : vector<16x32xf32> to vector<16x32xbf16>
    %c0_6 = arith.constant 0 : index
    %c0_7 = arith.constant 0 : index
    %11 = vector.load %arg4[%c0_6, %c0_7] : memref<32x96xbf16, #tpu.memory_space<vmem>>, vector<32x96xbf16>
    %cst_8 = arith.constant dense<0.000000e+00> : vector<16x96xf32>
    %12 = tpu.matmul %10, %11, %cst_8 {dimension_numbers = #tpu.dot_dimension_numbers<[1], [0], [0], [1], [0, 0, 1, 1], [], []>} : vector<16x32xbf16>, vector<32x96xbf16>, vector<16x96xf32> -> vector<16x96xf32>
    %13 = tpu.iota {dimensions = array<i32: 2>} : vector<2x8x8xi32>
    %14 = tpu.iota {dimensions = array<i32: 0>} : vector<2x8x8xi32>
    %c0_i32 = arith.constant 0 : i32
    %15 = vector.broadcast %c0_i32 : i32 to vector<2x8x8xi32>
    %c0_i32_9 = arith.constant 0 : i32
    %16 = vector.broadcast %c0_i32_9 : i32 to vector<2x8x8xi32>
    %17 = arith.cmpi eq, %14, %16 : vector<2x8x8xi32>
    %c0_i32_10 = arith.constant 0 : i32
    %18 = arith.addi %0, %c0_i32_10 : i32
    %19 = arith.index_cast %18 : i32 to index
    %20 = memref.load %arg1[%19] : memref<2xi32, #tpu.memory_space<smem>>
    %21 = vector.broadcast %20 : i32 to vector<2x8x8xi32>
    %22 = arith.select %17, %21, %15 : vector<2x8x8xi1>, vector<2x8x8xi32>
    %c1_i32 = arith.constant 1 : i32
    %23 = vector.broadcast %c1_i32 : i32 to vector<2x8x8xi32>
    %24 = arith.cmpi eq, %14, %23 : vector<2x8x8xi32>
    %c1_i32_11 = arith.constant 1 : i32
    %25 = arith.addi %0, %c1_i32_11 : i32
    %26 = arith.index_cast %25 : i32 to index
    %27 = memref.load %arg1[%26] : memref<2xi32, #tpu.memory_space<smem>>
    %28 = vector.broadcast %27 : i32 to vector<2x8x8xi32>
    %29 = arith.select %24, %28, %22 : vector<2x8x8xi1>, vector<2x8x8xi32>
    %30 = arith.cmpi slt, %13, %29 : vector<2x8x8xi32>
    %31 = vector.extract_strided_slice %12 {offsets = [0, 0], sizes = [16, 8], strides = [1, 1]} : vector<16x96xf32> to vector<16x8xf32>
    %32 = vector.extract_strided_slice %12 {offsets = [0, 32], sizes = [16, 8], strides = [1, 1]} : vector<16x96xf32> to vector<16x8xf32>
    %33 = vector.extract_strided_slice %12 {offsets = [0, 64], sizes = [16, 8], strides = [1, 1]} : vector<16x96xf32> to vector<16x8xf32>
    %34 = vector.shape_cast %31 : vector<16x8xf32> to vector<2x8x8xf32>
    %35 = arith.truncf %34 : vector<2x8x8xf32> to vector<2x8x8xbf16>
    %36 = vector.shape_cast %32 : vector<16x8xf32> to vector<2x8x8xf32>
    %37 = arith.truncf %36 : vector<2x8x8xf32> to vector<2x8x8xbf16>
    %38 = vector.shape_cast %33 : vector<16x8xf32> to vector<2x8x8xf32>
    %39 = arith.truncf %38 : vector<2x8x8xf32> to vector<2x8x8xbf16>
    "tpu.trace_start"() <{level = 10 : i32, message = "bqd,bkd->bqk"}> : () -> ()
    %cst_12 = arith.constant dense<0.000000e+00> : vector<2x8x8xf32>
    %40 = tpu.matmul %35, %37, %cst_12 {dimension_numbers = #tpu.dot_dimension_numbers<[2], [2], [1], [1], [0, 0, 0, 1, 1, 1], [0], [0]>} : vector<2x8x8xbf16>, vector<2x8x8xbf16>, vector<2x8x8xf32> -> vector<2x8x8xf32>
    "tpu.trace_stop"() : () -> ()
    %cst_13 = arith.constant 0.353553385 : f32
    %41 = vector.broadcast %cst_13 : f32 to vector<2x8x8xf32>
    %42 = arith.mulf %40, %41 : vector<2x8x8xf32>
    %43 = arith.truncf %31 : vector<16x8xf32> to vector<16x8xbf16>
    %c0_14 = arith.constant 0 : index
    %c0_15 = arith.constant 0 : index
    %c0_16 = arith.constant 0 : index
    %44 = vector.load %arg6[%c0_14, %c0_15, %c0_16] : memref<4x8x4xbf16, #tpu.memory_space<vmem>>, vector<1x8x4xbf16>
    %45 = vector.shape_cast %44 : vector<1x8x4xbf16> to vector<8x4xbf16>
    %cst_17 = arith.constant dense<0.000000e+00> : vector<16x4xf32>
    %46 = tpu.matmul %43, %45, %cst_17 {dimension_numbers = #tpu.dot_dimension_numbers<[1], [0], [0], [1], [0, 0, 1, 1], [], []>} : vector<16x8xbf16>, vector<8x4xbf16>, vector<16x4xf32> -> vector<16x4xf32>
    %cst_18 = arith.constant 0.353553385 : f32
    %47 = vector.broadcast %cst_18 : f32 to vector<16x4xf32>
    %48 = arith.mulf %46, %47 : vector<16x4xf32>
    %49 = vector.shape_cast %48 : vector<16x4xf32> to vector<2x8x4xf32>
    %cst_19 = arith.constant 0xFF800000 : f32
    %50 = vector.broadcast %cst_19 : f32 to vector<2x8x8xf32>
    %51 = arith.select %30, %42, %50 : vector<2x8x8xi1>, vector<2x8x8xf32>
    %cst_20 = arith.constant dense<0xFF800000> : vector<2x8xf32>
    %52 = vector.multi_reduction <maximumf>, %51, %cst_20 [2] : vector<2x8x8xf32> to vector<2x8xf32>
    %53 = vector.shape_cast %52 : vector<2x8xf32> to vector<2x8x1xf32>
    %cst_21 = arith.constant dense<0xFF800000> : vector<2x8xf32>
    %54 = vector.multi_reduction <maximumf>, %49, %cst_21 [2] : vector<2x8x4xf32> to vector<2x8xf32>
    %55 = vector.shape_cast %54 : vector<2x8xf32> to vector<2x8x1xf32>
    %56 = arith.maximumf %53, %55 : vector<2x8x1xf32>
    %57 = vector.broadcast %56 : vector<2x8x1xf32> to vector<2x8x8xf32>
    %58 = arith.subf %51, %57 : vector<2x8x8xf32>
    %59 = math.exp %58 : vector<2x8x8xf32>
    %60 = vector.broadcast %56 : vector<2x8x1xf32> to vector<2x8x4xf32>
    %61 = arith.subf %49, %60 : vector<2x8x4xf32>
    %62 = math.exp %61 : vector<2x8x4xf32>
    %cst_22 = arith.constant dense<0.000000e+00> : vector<2x8xf32>
    %63 = vector.multi_reduction <add>, %59, %cst_22 [2] : vector<2x8x8xf32> to vector<2x8xf32>
    %64 = vector.shape_cast %63 : vector<2x8xf32> to vector<2x8x1xf32>
    %cst_23 = arith.constant dense<0.000000e+00> : vector<2x8xf32>
    %65 = vector.multi_reduction <add>, %62, %cst_23 [2] : vector<2x8x4xf32> to vector<2x8xf32>
    %66 = vector.shape_cast %65 : vector<2x8xf32> to vector<2x8x1xf32>
    %67 = arith.addf %64, %66 : vector<2x8x1xf32>
    %68 = tpu.reciprocal %67 {approx = true} : vector<2x8x1xf32> -> vector<2x8x1xf32>
    %69 = vector.broadcast %68 : vector<2x8x1xf32> to vector<2x8x8xf32>
    %70 = arith.mulf %59, %69 : vector<2x8x8xf32>
    %71 = arith.truncf %70 : vector<2x8x8xf32> to vector<2x8x8xbf16>
    %72 = vector.broadcast %68 : vector<2x8x1xf32> to vector<2x8x4xf32>
    %73 = arith.mulf %62, %72 : vector<2x8x4xf32>
    %74 = vector.shape_cast %73 : vector<2x8x4xf32> to vector<16x4xf32>
    %75 = arith.truncf %74 : vector<16x4xf32> to vector<16x4xbf16>
    "tpu.trace_start"() <{level = 10 : i32, message = "bqk,bkd->bqd"}> : () -> ()
    %cst_24 = arith.constant dense<0.000000e+00> : vector<2x8x8xf32>
    %76 = tpu.matmul %71, %39, %cst_24 {dimension_numbers = #tpu.dot_dimension_numbers<[2], [1], [1], [2], [0, 0, 0, 1, 1, 2], [0], [0]>} : vector<2x8x8xbf16>, vector<2x8x8xbf16>, vector<2x8x8xf32> -> vector<2x8x8xf32>
    "tpu.trace_stop"() : () -> ()
    %77 = vector.shape_cast %76 : vector<2x8x8xf32> to vector<16x8xf32>
    %c0_25 = arith.constant 0 : index
    %c0_26 = arith.constant 0 : index
    %c0_27 = arith.constant 0 : index
    %78 = vector.load %arg7[%c0_25, %c0_26, %c0_27] : memref<4x4x8xbf16, #tpu.memory_space<vmem>>, vector<1x4x8xbf16>
    %79 = vector.shape_cast %78 : vector<1x4x8xbf16> to vector<4x8xbf16>
    %cst_28 = arith.constant dense<0.000000e+00> : vector<16x8xf32>
    %80 = tpu.matmul %75, %79, %cst_28 {dimension_numbers = #tpu.dot_dimension_numbers<[1], [0], [0], [1], [0, 0, 1, 1], [], []>} : vector<16x4xbf16>, vector<4x8xbf16>, vector<16x8xf32> -> vector<16x8xf32>
    %81 = arith.addf %77, %80 : vector<16x8xf32>
    %82 = vector.extract_strided_slice %12 {offsets = [0, 8], sizes = [16, 8], strides = [1, 1]} : vector<16x96xf32> to vector<16x8xf32>
    %83 = vector.extract_strided_slice %12 {offsets = [0, 40], sizes = [16, 8], strides = [1, 1]} : vector<16x96xf32> to vector<16x8xf32>
    %84 = vector.extract_strided_slice %12 {offsets = [0, 72], sizes = [16, 8], strides = [1, 1]} : vector<16x96xf32> to vector<16x8xf32>
    %85 = vector.shape_cast %82 : vector<16x8xf32> to vector<2x8x8xf32>
    %86 = arith.truncf %85 : vector<2x8x8xf32> to vector<2x8x8xbf16>
    %87 = vector.shape_cast %83 : vector<16x8xf32> to vector<2x8x8xf32>
    %88 = arith.truncf %87 : vector<2x8x8xf32> to vector<2x8x8xbf16>
    %89 = vector.shape_cast %84 : vector<16x8xf32> to vector<2x8x8xf32>
    %90 = arith.truncf %89 : vector<2x8x8xf32> to vector<2x8x8xbf16>
    "tpu.trace_start"() <{level = 10 : i32, message = "bqd,bkd->bqk"}> : () -> ()
    %cst_29 = arith.constant dense<0.000000e+00> : vector<2x8x8xf32>
    %91 = tpu.matmul %86, %88, %cst_29 {dimension_numbers = #tpu.dot_dimension_numbers<[2], [2], [1], [1], [0, 0, 0, 1, 1, 1], [0], [0]>} : vector<2x8x8xbf16>, vector<2x8x8xbf16>, vector<2x8x8xf32> -> vector<2x8x8xf32>
    "tpu.trace_stop"() : () -> ()
    %cst_30 = arith.constant 0.353553385 : f32
    %92 = vector.broadcast %cst_30 : f32 to vector<2x8x8xf32>
    %93 = arith.mulf %91, %92 : vector<2x8x8xf32>
    %94 = arith.truncf %82 : vector<16x8xf32> to vector<16x8xbf16>
    %c1 = arith.constant 1 : index
    %c0_31 = arith.constant 0 : index
    %c0_32 = arith.constant 0 : index
    %95 = vector.load %arg6[%c1, %c0_31, %c0_32] : memref<4x8x4xbf16, #tpu.memory_space<vmem>>, vector<1x8x4xbf16>
    %96 = vector.shape_cast %95 : vector<1x8x4xbf16> to vector<8x4xbf16>
    %cst_33 = arith.constant dense<0.000000e+00> : vector<16x4xf32>
    %97 = tpu.matmul %94, %96, %cst_33 {dimension_numbers = #tpu.dot_dimension_numbers<[1], [0], [0], [1], [0, 0, 1, 1], [], []>} : vector<16x8xbf16>, vector<8x4xbf16>, vector<16x4xf32> -> vector<16x4xf32>
    %cst_34 = arith.constant 0.353553385 : f32
    %98 = vector.broadcast %cst_34 : f32 to vector<16x4xf32>
    %99 = arith.mulf %97, %98 : vector<16x4xf32>
    %100 = vector.shape_cast %99 : vector<16x4xf32> to vector<2x8x4xf32>
    %cst_35 = arith.constant 0xFF800000 : f32
    %101 = vector.broadcast %cst_35 : f32 to vector<2x8x8xf32>
    %102 = arith.select %30, %93, %101 : vector<2x8x8xi1>, vector<2x8x8xf32>
    %cst_36 = arith.constant dense<0xFF800000> : vector<2x8xf32>
    %103 = vector.multi_reduction <maximumf>, %102, %cst_36 [2] : vector<2x8x8xf32> to vector<2x8xf32>
    %104 = vector.shape_cast %103 : vector<2x8xf32> to vector<2x8x1xf32>
    %cst_37 = arith.constant dense<0xFF800000> : vector<2x8xf32>
    %105 = vector.multi_reduction <maximumf>, %100, %cst_37 [2] : vector<2x8x4xf32> to vector<2x8xf32>
    %106 = vector.shape_cast %105 : vector<2x8xf32> to vector<2x8x1xf32>
    %107 = arith.maximumf %104, %106 : vector<2x8x1xf32>
    %108 = vector.broadcast %107 : vector<2x8x1xf32> to vector<2x8x8xf32>
    %109 = arith.subf %102, %108 : vector<2x8x8xf32>
    %110 = math.exp %109 : vector<2x8x8xf32>
    %111 = vector.broadcast %107 : vector<2x8x1xf32> to vector<2x8x4xf32>
    %112 = arith.subf %100, %111 : vector<2x8x4xf32>
    %113 = math.exp %112 : vector<2x8x4xf32>
    %cst_38 = arith.constant dense<0.000000e+00> : vector<2x8xf32>
    %114 = vector.multi_reduction <add>, %110, %cst_38 [2] : vector<2x8x8xf32> to vector<2x8xf32>
    %115 = vector.shape_cast %114 : vector<2x8xf32> to vector<2x8x1xf32>
    %cst_39 = arith.constant dense<0.000000e+00> : vector<2x8xf32>
    %116 = vector.multi_reduction <add>, %113, %cst_39 [2] : vector<2x8x4xf32> to vector<2x8xf32>
    %117 = vector.shape_cast %116 : vector<2x8xf32> to vector<2x8x1xf32>
    %118 = arith.addf %115, %117 : vector<2x8x1xf32>
    %119 = tpu.reciprocal %118 {approx = true} : vector<2x8x1xf32> -> vector<2x8x1xf32>
    %120 = vector.broadcast %119 : vector<2x8x1xf32> to vector<2x8x8xf32>
    %121 = arith.mulf %110, %120 : vector<2x8x8xf32>
    %122 = arith.truncf %121 : vector<2x8x8xf32> to vector<2x8x8xbf16>
    %123 = vector.broadcast %119 : vector<2x8x1xf32> to vector<2x8x4xf32>
    %124 = arith.mulf %113, %123 : vector<2x8x4xf32>
    %125 = vector.shape_cast %124 : vector<2x8x4xf32> to vector<16x4xf32>
    %126 = arith.truncf %125 : vector<16x4xf32> to vector<16x4xbf16>
    "tpu.trace_start"() <{level = 10 : i32, message = "bqk,bkd->bqd"}> : () -> ()
    %cst_40 = arith.constant dense<0.000000e+00> : vector<2x8x8xf32>
    %127 = tpu.matmul %122, %90, %cst_40 {dimension_numbers = #tpu.dot_dimension_numbers<[2], [1], [1], [2], [0, 0, 0, 1, 1, 2], [0], [0]>} : vector<2x8x8xbf16>, vector<2x8x8xbf16>, vector<2x8x8xf32> -> vector<2x8x8xf32>
    "tpu.trace_stop"() : () -> ()
    %128 = vector.shape_cast %127 : vector<2x8x8xf32> to vector<16x8xf32>
    %c1_41 = arith.constant 1 : index
    %c0_42 = arith.constant 0 : index
    %c0_43 = arith.constant 0 : index
    %129 = vector.load %arg7[%c1_41, %c0_42, %c0_43] : memref<4x4x8xbf16, #tpu.memory_space<vmem>>, vector<1x4x8xbf16>
    %130 = vector.shape_cast %129 : vector<1x4x8xbf16> to vector<4x8xbf16>
    %cst_44 = arith.constant dense<0.000000e+00> : vector<16x8xf32>
    %131 = tpu.matmul %126, %130, %cst_44 {dimension_numbers = #tpu.dot_dimension_numbers<[1], [0], [0], [1], [0, 0, 1, 1], [], []>} : vector<16x4xbf16>, vector<4x8xbf16>, vector<16x8xf32> -> vector<16x8xf32>
    %132 = arith.addf %128, %131 : vector<16x8xf32>
    %133 = vector.extract_strided_slice %12 {offsets = [0, 16], sizes = [16, 8], strides = [1, 1]} : vector<16x96xf32> to vector<16x8xf32>
    %134 = vector.extract_strided_slice %12 {offsets = [0, 48], sizes = [16, 8], strides = [1, 1]} : vector<16x96xf32> to vector<16x8xf32>
    %135 = vector.extract_strided_slice %12 {offsets = [0, 80], sizes = [16, 8], strides = [1, 1]} : vector<16x96xf32> to vector<16x8xf32>
    %136 = vector.shape_cast %133 : vector<16x8xf32> to vector<2x8x8xf32>
    %137 = arith.truncf %136 : vector<2x8x8xf32> to vector<2x8x8xbf16>
    %138 = vector.shape_cast %134 : vector<16x8xf32> to vector<2x8x8xf32>
    %139 = arith.truncf %138 : vector<2x8x8xf32> to vector<2x8x8xbf16>
    %140 = vector.shape_cast %135 : vector<16x8xf32> to vector<2x8x8xf32>
    %141 = arith.truncf %140 : vector<2x8x8xf32> to vector<2x8x8xbf16>
    "tpu.trace_start"() <{level = 10 : i32, message = "bqd,bkd->bqk"}> : () -> ()
    %cst_45 = arith.constant dense<0.000000e+00> : vector<2x8x8xf32>
    %142 = tpu.matmul %137, %139, %cst_45 {dimension_numbers = #tpu.dot_dimension_numbers<[2], [2], [1], [1], [0, 0, 0, 1, 1, 1], [0], [0]>} : vector<2x8x8xbf16>, vector<2x8x8xbf16>, vector<2x8x8xf32> -> vector<2x8x8xf32>
    "tpu.trace_stop"() : () -> ()
    %cst_46 = arith.constant 0.353553385 : f32
    %143 = vector.broadcast %cst_46 : f32 to vector<2x8x8xf32>
    %144 = arith.mulf %142, %143 : vector<2x8x8xf32>
    %145 = arith.truncf %133 : vector<16x8xf32> to vector<16x8xbf16>
    %c2 = arith.constant 2 : index
    %c0_47 = arith.constant 0 : index
    %c0_48 = arith.constant 0 : index
    %146 = vector.load %arg6[%c2, %c0_47, %c0_48] : memref<4x8x4xbf16, #tpu.memory_space<vmem>>, vector<1x8x4xbf16>
    %147 = vector.shape_cast %146 : vector<1x8x4xbf16> to vector<8x4xbf16>
    %cst_49 = arith.constant dense<0.000000e+00> : vector<16x4xf32>
    %148 = tpu.matmul %145, %147, %cst_49 {dimension_numbers = #tpu.dot_dimension_numbers<[1], [0], [0], [1], [0, 0, 1, 1], [], []>} : vector<16x8xbf16>, vector<8x4xbf16>, vector<16x4xf32> -> vector<16x4xf32>
    %cst_50 = arith.constant 0.353553385 : f32
    %149 = vector.broadcast %cst_50 : f32 to vector<16x4xf32>
    %150 = arith.mulf %148, %149 : vector<16x4xf32>
    %151 = vector.shape_cast %150 : vector<16x4xf32> to vector<2x8x4xf32>
    %cst_51 = arith.constant 0xFF800000 : f32
    %152 = vector.broadcast %cst_51 : f32 to vector<2x8x8xf32>
    %153 = arith.select %30, %144, %152 : vector<2x8x8xi1>, vector<2x8x8xf32>
    %cst_52 = arith.constant dense<0xFF800000> : vector<2x8xf32>
    %154 = vector.multi_reduction <maximumf>, %153, %cst_52 [2] : vector<2x8x8xf32> to vector<2x8xf32>
    %155 = vector.shape_cast %154 : vector<2x8xf32> to vector<2x8x1xf32>
    %cst_53 = arith.constant dense<0xFF800000> : vector<2x8xf32>
    %156 = vector.multi_reduction <maximumf>, %151, %cst_53 [2] : vector<2x8x4xf32> to vector<2x8xf32>
    %157 = vector.shape_cast %156 : vector<2x8xf32> to vector<2x8x1xf32>
    %158 = arith.maximumf %155, %157 : vector<2x8x1xf32>
    %159 = vector.broadcast %158 : vector<2x8x1xf32> to vector<2x8x8xf32>
    %160 = arith.subf %153, %159 : vector<2x8x8xf32>
    %161 = math.exp %160 : vector<2x8x8xf32>
    %162 = vector.broadcast %158 : vector<2x8x1xf32> to vector<2x8x4xf32>
    %163 = arith.subf %151, %162 : vector<2x8x4xf32>
    %164 = math.exp %163 : vector<2x8x4xf32>
    %cst_54 = arith.constant dense<0.000000e+00> : vector<2x8xf32>
    %165 = vector.multi_reduction <add>, %161, %cst_54 [2] : vector<2x8x8xf32> to vector<2x8xf32>
    %166 = vector.shape_cast %165 : vector<2x8xf32> to vector<2x8x1xf32>
    %cst_55 = arith.constant dense<0.000000e+00> : vector<2x8xf32>
    %167 = vector.multi_reduction <add>, %164, %cst_55 [2] : vector<2x8x4xf32> to vector<2x8xf32>
    %168 = vector.shape_cast %167 : vector<2x8xf32> to vector<2x8x1xf32>
    %169 = arith.addf %166, %168 : vector<2x8x1xf32>
    %170 = tpu.reciprocal %169 {approx = true} : vector<2x8x1xf32> -> vector<2x8x1xf32>
    %171 = vector.broadcast %170 : vector<2x8x1xf32> to vector<2x8x8xf32>
    %172 = arith.mulf %161, %171 : vector<2x8x8xf32>
    %173 = arith.truncf %172 : vector<2x8x8xf32> to vector<2x8x8xbf16>
    %174 = vector.broadcast %170 : vector<2x8x1xf32> to vector<2x8x4xf32>
    %175 = arith.mulf %164, %174 : vector<2x8x4xf32>
    %176 = vector.shape_cast %175 : vector<2x8x4xf32> to vector<16x4xf32>
    %177 = arith.truncf %176 : vector<16x4xf32> to vector<16x4xbf16>
    "tpu.trace_start"() <{level = 10 : i32, message = "bqk,bkd->bqd"}> : () -> ()
    %cst_56 = arith.constant dense<0.000000e+00> : vector<2x8x8xf32>
    %178 = tpu.matmul %173, %141, %cst_56 {dimension_numbers = #tpu.dot_dimension_numbers<[2], [1], [1], [2], [0, 0, 0, 1, 1, 2], [0], [0]>} : vector<2x8x8xbf16>, vector<2x8x8xbf16>, vector<2x8x8xf32> -> vector<2x8x8xf32>
    "tpu.trace_stop"() : () -> ()
    %179 = vector.shape_cast %178 : vector<2x8x8xf32> to vector<16x8xf32>
    %c2_57 = arith.constant 2 : index
    %c0_58 = arith.constant 0 : index
    %c0_59 = arith.constant 0 : index
    %180 = vector.load %arg7[%c2_57, %c0_58, %c0_59] : memref<4x4x8xbf16, #tpu.memory_space<vmem>>, vector<1x4x8xbf16>
    %181 = vector.shape_cast %180 : vector<1x4x8xbf16> to vector<4x8xbf16>
    %cst_60 = arith.constant dense<0.000000e+00> : vector<16x8xf32>
    %182 = tpu.matmul %177, %181, %cst_60 {dimension_numbers = #tpu.dot_dimension_numbers<[1], [0], [0], [1], [0, 0, 1, 1], [], []>} : vector<16x4xbf16>, vector<4x8xbf16>, vector<16x8xf32> -> vector<16x8xf32>
    %183 = arith.addf %179, %182 : vector<16x8xf32>
    %184 = vector.extract_strided_slice %12 {offsets = [0, 24], sizes = [16, 8], strides = [1, 1]} : vector<16x96xf32> to vector<16x8xf32>
    %185 = vector.extract_strided_slice %12 {offsets = [0, 56], sizes = [16, 8], strides = [1, 1]} : vector<16x96xf32> to vector<16x8xf32>
    %186 = vector.extract_strided_slice %12 {offsets = [0, 88], sizes = [16, 8], strides = [1, 1]} : vector<16x96xf32> to vector<16x8xf32>
    %187 = vector.shape_cast %184 : vector<16x8xf32> to vector<2x8x8xf32>
    %188 = arith.truncf %187 : vector<2x8x8xf32> to vector<2x8x8xbf16>
    %189 = vector.shape_cast %185 : vector<16x8xf32> to vector<2x8x8xf32>
    %190 = arith.truncf %189 : vector<2x8x8xf32> to vector<2x8x8xbf16>
    %191 = vector.shape_cast %186 : vector<16x8xf32> to vector<2x8x8xf32>
    %192 = arith.truncf %191 : vector<2x8x8xf32> to vector<2x8x8xbf16>
    "tpu.trace_start"() <{level = 10 : i32, message = "bqd,bkd->bqk"}> : () -> ()
    %cst_61 = arith.constant dense<0.000000e+00> : vector<2x8x8xf32>
    %193 = tpu.matmul %188, %190, %cst_61 {dimension_numbers = #tpu.dot_dimension_numbers<[2], [2], [1], [1], [0, 0, 0, 1, 1, 1], [0], [0]>} : vector<2x8x8xbf16>, vector<2x8x8xbf16>, vector<2x8x8xf32> -> vector<2x8x8xf32>
    "tpu.trace_stop"() : () -> ()
    %cst_62 = arith.constant 0.353553385 : f32
    %194 = vector.broadcast %cst_62 : f32 to vector<2x8x8xf32>
    %195 = arith.mulf %193, %194 : vector<2x8x8xf32>
    %196 = arith.truncf %184 : vector<16x8xf32> to vector<16x8xbf16>
    %c3 = arith.constant 3 : index
    %c0_63 = arith.constant 0 : index
    %c0_64 = arith.constant 0 : index
    %197 = vector.load %arg6[%c3, %c0_63, %c0_64] : memref<4x8x4xbf16, #tpu.memory_space<vmem>>, vector<1x8x4xbf16>
    %198 = vector.shape_cast %197 : vector<1x8x4xbf16> to vector<8x4xbf16>
    %cst_65 = arith.constant dense<0.000000e+00> : vector<16x4xf32>
    %199 = tpu.matmul %196, %198, %cst_65 {dimension_numbers = #tpu.dot_dimension_numbers<[1], [0], [0], [1], [0, 0, 1, 1], [], []>} : vector<16x8xbf16>, vector<8x4xbf16>, vector<16x4xf32> -> vector<16x4xf32>
    %cst_66 = arith.constant 0.353553385 : f32
    %200 = vector.broadcast %cst_66 : f32 to vector<16x4xf32>
    %201 = arith.mulf %199, %200 : vector<16x4xf32>
    %202 = vector.shape_cast %201 : vector<16x4xf32> to vector<2x8x4xf32>
    %cst_67 = arith.constant 0xFF800000 : f32
    %203 = vector.broadcast %cst_67 : f32 to vector<2x8x8xf32>
    %204 = arith.select %30, %195, %203 : vector<2x8x8xi1>, vector<2x8x8xf32>
    %cst_68 = arith.constant dense<0xFF800000> : vector<2x8xf32>
    %205 = vector.multi_reduction <maximumf>, %204, %cst_68 [2] : vector<2x8x8xf32> to vector<2x8xf32>
    %206 = vector.shape_cast %205 : vector<2x8xf32> to vector<2x8x1xf32>
    %cst_69 = arith.constant dense<0xFF800000> : vector<2x8xf32>
    %207 = vector.multi_reduction <maximumf>, %202, %cst_69 [2] : vector<2x8x4xf32> to vector<2x8xf32>
    %208 = vector.shape_cast %207 : vector<2x8xf32> to vector<2x8x1xf32>
    %209 = arith.maximumf %206, %208 : vector<2x8x1xf32>
    %210 = vector.broadcast %209 : vector<2x8x1xf32> to vector<2x8x8xf32>
    %211 = arith.subf %204, %210 : vector<2x8x8xf32>
    %212 = math.exp %211 : vector<2x8x8xf32>
    %213 = vector.broadcast %209 : vector<2x8x1xf32> to vector<2x8x4xf32>
    %214 = arith.subf %202, %213 : vector<2x8x4xf32>
    %215 = math.exp %214 : vector<2x8x4xf32>
    %cst_70 = arith.constant dense<0.000000e+00> : vector<2x8xf32>
    %216 = vector.multi_reduction <add>, %212, %cst_70 [2] : vector<2x8x8xf32> to vector<2x8xf32>
    %217 = vector.shape_cast %216 : vector<2x8xf32> to vector<2x8x1xf32>
    %cst_71 = arith.constant dense<0.000000e+00> : vector<2x8xf32>
    %218 = vector.multi_reduction <add>, %215, %cst_71 [2] : vector<2x8x4xf32> to vector<2x8xf32>
    %219 = vector.shape_cast %218 : vector<2x8xf32> to vector<2x8x1xf32>
    %220 = arith.addf %217, %219 : vector<2x8x1xf32>
    %221 = tpu.reciprocal %220 {approx = true} : vector<2x8x1xf32> -> vector<2x8x1xf32>
    %222 = vector.broadcast %221 : vector<2x8x1xf32> to vector<2x8x8xf32>
    %223 = arith.mulf %212, %222 : vector<2x8x8xf32>
    %224 = arith.truncf %223 : vector<2x8x8xf32> to vector<2x8x8xbf16>
    %225 = vector.broadcast %221 : vector<2x8x1xf32> to vector<2x8x4xf32>
    %226 = arith.mulf %215, %225 : vector<2x8x4xf32>
    %227 = vector.shape_cast %226 : vector<2x8x4xf32> to vector<16x4xf32>
    %228 = arith.truncf %227 : vector<16x4xf32> to vector<16x4xbf16>
    "tpu.trace_start"() <{level = 10 : i32, message = "bqk,bkd->bqd"}> : () -> ()
    %cst_72 = arith.constant dense<0.000000e+00> : vector<2x8x8xf32>
    %229 = tpu.matmul %224, %192, %cst_72 {dimension_numbers = #tpu.dot_dimension_numbers<[2], [1], [1], [2], [0, 0, 0, 1, 1, 2], [0], [0]>} : vector<2x8x8xbf16>, vector<2x8x8xbf16>, vector<2x8x8xf32> -> vector<2x8x8xf32>
    "tpu.trace_stop"() : () -> ()
    %230 = vector.shape_cast %229 : vector<2x8x8xf32> to vector<16x8xf32>
    %c3_73 = arith.constant 3 : index
    %c0_74 = arith.constant 0 : index
    %c0_75 = arith.constant 0 : index
    %231 = vector.load %arg7[%c3_73, %c0_74, %c0_75] : memref<4x4x8xbf16, #tpu.memory_space<vmem>>, vector<1x4x8xbf16>
    %232 = vector.shape_cast %231 : vector<1x4x8xbf16> to vector<4x8xbf16>
    %cst_76 = arith.constant dense<0.000000e+00> : vector<16x8xf32>
    %233 = tpu.matmul %228, %232, %cst_76 {dimension_numbers = #tpu.dot_dimension_numbers<[1], [0], [0], [1], [0, 0, 1, 1], [], []>} : vector<16x4xbf16>, vector<4x8xbf16>, vector<16x8xf32> -> vector<16x8xf32>
    %234 = arith.addf %230, %233 : vector<16x8xf32>
    %235 = tpu.concatenate %81, %132, %183, %234 in 1 : vector<16x8xf32>, vector<16x8xf32>, vector<16x8xf32>, vector<16x8xf32> -> vector<16x32xf32>
    %236 = arith.truncf %235 : vector<16x32xf32> to vector<16x32xbf16>
    %c0_77 = arith.constant 0 : index
    %c0_78 = arith.constant 0 : index
    %237 = vector.load %arg5[%c0_77, %c0_78] : memref<32x32xbf16, #tpu.memory_space<vmem>>, vector<32x32xbf16>
    %cst_79 = arith.constant dense<0.000000e+00> : vector<16x32xf32>
    %238 = tpu.matmul %236, %237, %cst_79 {dimension_numbers = #tpu.dot_dimension_numbers<[1], [0], [0], [1], [0, 0, 1, 1], [], []>} : vector<16x32xbf16>, vector<32x32xbf16>, vector<16x32xf32> -> vector<16x32xf32>
    %239 = arith.addf %1, %238 : vector<16x32xf32>
    %cst_80 = arith.constant dense<0.000000e+00> : vector<16xf32>
    %240 = vector.multi_reduction <add>, %239, %cst_80 [1] : vector<16x32xf32> to vector<16xf32>
    %241 = vector.shape_cast %240 : vector<16xf32> to vector<16x1xf32>
    %cst_81 = arith.constant 3.200000e+01 : f32
    %242 = vector.broadcast %cst_81 : f32 to vector<16x1xf32>
    %243 = arith.divf %241, %242 : vector<16x1xf32>
    %244 = vector.broadcast %243 : vector<16x1xf32> to vector<16x32xf32>
    %245 = arith.subf %239, %244 : vector<16x32xf32>
    %246 = vector.broadcast %243 : vector<16x1xf32> to vector<16x32xf32>
    %247 = arith.subf %239, %246 : vector<16x32xf32>
    %248 = arith.mulf %245, %247 : vector<16x32xf32>
    %cst_82 = arith.constant dense<0.000000e+00> : vector<16xf32>
    %249 = vector.multi_reduction <add>, %248, %cst_82 [1] : vector<16x32xf32> to vector<16xf32>
    %250 = vector.shape_cast %249 : vector<16xf32> to vector<16x1xf32>
    %cst_83 = arith.constant 3.200000e+01 : f32
    %251 = vector.broadcast %cst_83 : f32 to vector<16x1xf32>
    %252 = arith.divf %250, %251 : vector<16x1xf32>
    %253 = vector.broadcast %243 : vector<16x1xf32> to vector<16x32xf32>
    %254 = arith.subf %239, %253 : vector<16x32xf32>
    %cst_84 = arith.constant 9.99999974E-6 : f32
    %255 = vector.broadcast %cst_84 : f32 to vector<16x1xf32>
    %256 = arith.addf %252, %255 : vector<16x1xf32>
    %257 = math.rsqrt %256 : vector<16x1xf32>
    %258 = vector.broadcast %257 : vector<16x1xf32> to vector<16x32xf32>
    %259 = arith.mulf %254, %258 : vector<16x32xf32>
    %c1_85 = arith.constant 1 : index
    %c0_86 = arith.constant 0 : index
    %260 = vector.load %arg8[%c1_85, %c0_86] : memref<3x32xf32, #tpu.memory_space<vmem>>, vector<1x32xf32>
    %261 = vector.broadcast %260 : vector<1x32xf32> to vector<16x32xf32>
    %262 = arith.mulf %259, %261 : vector<16x32xf32>
    %c2_87 = arith.constant 2 : index
    %c0_88 = arith.constant 0 : index
    %263 = vector.load %arg8[%c2_87, %c0_88] : memref<3x32xf32, #tpu.memory_space<vmem>>, vector<1x32xf32>
    %264 = vector.broadcast %263 : vector<1x32xf32> to vector<16x32xf32>
    %265 = arith.addf %262, %264 : vector<16x32xf32>
    %c0_89 = arith.constant 0 : index
    %c0_90 = arith.constant 0 : index
    %266 = vector.load %arg9[%c0_89, %c0_90] : memref<16x32xf32, #tpu.memory_space<vmem>>, vector<16x32xf32>
    tpu.vector_store %arg9[%c0_89, %c0_90], %265 {strides = array<i32>} : memref<16x32xf32, #tpu.memory_space<vmem>>, vector<16x32xf32>,
    return
  }
  func.func @transform_0(%arg0: i32, %arg1: memref<2xi32, #tpu.memory_space<smem>>) -> (i32, i32) {
    %c0_i32 = arith.constant 0 : i32
    %c0_i32_0 = arith.constant 0 : i32
    return %arg0, %c0_i32 : i32, i32
  }
  func.func @transform_1(%arg0: i32, %arg1: memref<2xi32, #tpu.memory_space<smem>>) -> (i32, i32) {
    %c0_i32 = arith.constant 0 : i32
    %c0_i32_0 = arith.constant 0 : i32
    %c0_i32_1 = arith.constant 0 : i32
    return %c0_i32, %c0_i32_0 : i32, i32
  }
  func.func @transform_2(%arg0: i32, %arg1: memref<2xi32, #tpu.memory_space<smem>>) -> (i32, i32) {
    %c0_i32 = arith.constant 0 : i32
    %c0_i32_0 = arith.constant 0 : i32
    %c0_i32_1 = arith.constant 0 : i32
    return %c0_i32, %c0_i32_0 : i32, i32
  }
  func.func @transform_3(%arg0: i32, %arg1: memref<2xi32, #tpu.memory_space<smem>>) -> (i32, i32) {
    %c0_i32 = arith.constant 0 : i32
    %c0_i32_0 = arith.constant 0 : i32
    %c0_i32_1 = arith.constant 0 : i32
    return %c0_i32, %c0_i32_0 : i32, i32
  }
  func.func @transform_4(%arg0: i32, %arg1: memref<2xi32, #tpu.memory_space<smem>>) -> (i32, i32, i32) {
    %c0_i32 = arith.constant 0 : i32
    %c0_i32_0 = arith.constant 0 : i32
    %c0_i32_1 = arith.constant 0 : i32
    %c0_i32_2 = arith.constant 0 : i32
    return %c0_i32, %c0_i32_0, %c0_i32_1 : i32, i32, i32
  }
  func.func @transform_5(%arg0: i32, %arg1: memref<2xi32, #tpu.memory_space<smem>>) -> (i32, i32, i32) {
    %c0_i32 = arith.constant 0 : i32
    %c0_i32_0 = arith.constant 0 : i32
    %c0_i32_1 = arith.constant 0 : i32
    %c0_i32_2 = arith.constant 0 : i32
    return %c0_i32, %c0_i32_0, %c0_i32_1 : i32, i32, i32
  }
  func.func @transform_6(%arg0: i32, %arg1: memref<2xi32, #tpu.memory_space<smem>>) -> (i32, i32) {
    %c0_i32 = arith.constant 0 : i32
    %c0_i32_0 = arith.constant 0 : i32
    %c0_i32_1 = arith.constant 0 : i32
    return %c0_i32, %c0_i32_0 : i32, i32
  }
  func.func @transform_7(%arg0: i32, %arg1: memref<2xi32, #tpu.memory_space<smem>>) -> (i32, i32) {
    %c0_i32 = arith.constant 0 : i32
    %c0_i32_0 = arith.constant 0 : i32
    return %arg0, %c0_i32 : i32, i32
  }
}

</mosaic_0001>

<llo_original>
// kernel: tpu_custom_call.1
$region0: #{tpu_custom_call.1}
  #allocation0 [shape = 'u32[]', space=smem, size = 0x4, offset = 0x4, fixed_abs, tag = 'smem constant byte address 0x4 - core index']
  #allocation1 [shape = 'u32[72,128]{1,0:T(1,128)}', space=vmem, size = 0x9000, scoped, tag = 'internal scratch']
  #allocation2 [shape = 's32[1]{0}', space=sflag, size = 0x4, scoped, tag = 'scoped memory for tpu_custom_call.1']
  #allocation3 [shape = 'u8[512]{0}', space=smem, size = 0x200, scoped, tag = 'prefetched SMEM operand 0']
  %s0 = inlined_call_operand.hbm [shape: s32[2], index: 0, kind: input, shape index: {}]
  %s1 = inlined_call_operand.vmem [shape: f32[16,32], index: 1, kind: input, shape index: {}]
  %s2 = inlined_call_operand.hbm [shape: bf16[32,32], index: 2, kind: input, shape index: {}]
  %s3 = inlined_call_operand.hbm [shape: bf16[32,96], index: 3, kind: input, shape index: {}]
  %s4 = inlined_call_operand.hbm [shape: bf16[32,32], index: 4, kind: input, shape index: {}]
  %s5 = inlined_call_operand.vmem [shape: bf16[4,8,4], index: 5, kind: input, shape index: {}]
  %s6 = inlined_call_operand.vmem [shape: bf16[4,4,8], index: 6, kind: input, shape index: {}]
  %s7 = inlined_call_operand.vmem [shape: f32[3,32], index: 7, kind: input, shape index: {}]
  %s8 = inlined_call_operand.hbm [shape: f32[16,32], index: 8, kind: output, shape index: {}]
  %s9 = sld [smem:[#allocation0]]
  $region50: #{tpu_custom_call.1} parent=0
    _
  %s11 = ssub.s32 1, %s9
  %s12 = scalar_select 0, %s11, %s9
  %s14 = sshll.u32 %s0, 4
  %s15 = int_to_ptr.hbm [resolvable:$true] %s14
  %17 = dma.hbm_to_smem %s15, 16, [#allocation3], [#allocation2]
  %19 = dma.done [#allocation2], 16
  %20 = sfence
  $region1: #{tpu_custom_call.1} parent=0
    #allocation4 [shape = 'u8[8192]{0}', space=vmem, size = 0x2000, scoped, tag = 'input window, operand 2, single buffered']
    #allocation5 [shape = 's32[1]{0}', space=sflag, size = 0x4, scoped, tag = 'scoped memory for tpu_custom_call.1']
    #allocation6 [shape = 's32[1]{0}', space=sflag, size = 0x4, scoped, tag = 'scoped memory for tpu_custom_call.1']
    #allocation7 [shape = 'u8[8192]{0}', space=vmem, size = 0x2000, scoped, tag = 'input window, operand 3, single buffered']
    #allocation8 [shape = 's32[1]{0}', space=sflag, size = 0x4, scoped, tag = 'scoped memory for tpu_custom_call.1']
    #allocation9 [shape = 'u8[8192]{0}', space=vmem, size = 0x2000, scoped, tag = 'input window, operand 4, single buffered']
    #allocation10 [shape = 'u8[8192]{0}', space=vmem, size = 0x2000, scoped, tag = 'output window, operand 0, single buffered']
    %21 = vsyncpa [#allocation5], 0
    %22 = vsyncpa [#allocation8], 0
    %23 = vsyncpa [#allocation6], 0
    // Predicated region
    $region2: #{tpu_custom_call.1} parent=1 // pred_check
      _
    $region3: #{tpu_custom_call.1} parent=1 // pred_check_branch
      %25 = sbr.rel (0) target = $region5
    $region4: #{tpu_custom_call.1} parent=1 // pred_region
      _
    $region5: #{tpu_custom_call.1} parent=1 // pred_fallthru
      _
    // Predicated region
    $region6: #{tpu_custom_call.1} parent=1 // pred_check
      _
    $region7: #{tpu_custom_call.1} parent=1 // pred_check_branch
      %27 = sbr.rel (0) target = $region9
    $region8: #{tpu_custom_call.1} parent=1 // pred_region
      %29 = vsyncadd [#allocation5], 0
      %s30 = sshll.u32 %s2, 4
      %s31 = int_to_ptr.hbm [resolvable:$true] %s30
      %s32 = sshll.u32 [#allocation4], 4
      %s33 = int_to_ptr.vmem [resolvable:$true] %s32
      %38 = dma.hbm_to_vmem [thread:$0]  %s31, 256, %s33, [#allocation5], 64, 64, 4
    $region9: #{tpu_custom_call.1} parent=1 // pred_fallthru
      _
    // Predicated region
    $region10: #{tpu_custom_call.1} parent=1 // pred_check
      _
    $region11: #{tpu_custom_call.1} parent=1 // pred_check_branch
      %40 = sbr.rel (0) target = $region13
    $region12: #{tpu_custom_call.1} parent=1 // pred_region
      %42 = vsyncadd [#allocation8], 0
      %s43 = sshll.u32 %s3, 4
      %s44 = int_to_ptr.hbm [resolvable:$true] %s43
      %s45 = sshll.u32 [#allocation7], 4
      %s46 = int_to_ptr.vmem [resolvable:$true] %s45
      %51 = dma.hbm_to_vmem [thread:$0]  %s44, 256, %s46, [#allocation8], 64, 64, 4
    $region13: #{tpu_custom_call.1} parent=1 // pred_fallthru
      _
    // Predicated region
    $region14: #{tpu_custom_call.1} parent=1 // pred_check
      _
    $region15: #{tpu_custom_call.1} parent=1 // pred_check_branch
      %53 = sbr.rel (0) target = $region17
    $region16: #{tpu_custom_call.1} parent=1 // pred_region
      %55 = vsyncadd [#allocation8], 0
      %s56 = sshll.u32 %s4, 4
      %s57 = int_to_ptr.hbm [resolvable:$true] %s56
      %s58 = sshll.u32 [#allocation9], 4
      %s59 = int_to_ptr.vmem [resolvable:$true] %s58
      %64 = dma.hbm_to_vmem [thread:$0]  %s57, 256, %s59, [#allocation8], 64, 64, 4
    $region17: #{tpu_custom_call.1} parent=1 // pred_fallthru
      _
    // Predicated region
    $region18: #{tpu_custom_call.1} parent=1 // pred_check
      _
    $region19: #{tpu_custom_call.1} parent=1 // pred_check_branch
      %66 = sbr.rel (0) target = $region21
    $region20: #{tpu_custom_call.1} parent=1 // pred_region
      _
    $region21: #{tpu_custom_call.1} parent=1 // pred_fallthru
      _
    // Predicated region
    $region22: #{tpu_custom_call.1} parent=1 // pred_check
      _
    $region23: #{tpu_custom_call.1} parent=1 // pred_check_branch
      %68 = sbr.rel (0) target = $region25
    $region24: #{tpu_custom_call.1} parent=1 // pred_region
      _
    $region25: #{tpu_custom_call.1} parent=1 // pred_fallthru
      _
    // Predicated region
    $region26: #{tpu_custom_call.1} parent=1 // pred_check
      _
    $region27: #{tpu_custom_call.1} parent=1 // pred_check_branch
      %70 = sbr.rel (0) target = $region29
    $region28: #{tpu_custom_call.1} parent=1 // pred_region
      _
    $region29: #{tpu_custom_call.1} parent=1 // pred_fallthru
      _
    // Predicated region
    $region30: #{tpu_custom_call.1} parent=1 // pred_check
      _
    $region31: #{tpu_custom_call.1} parent=1 // pred_check_branch
      %72 = sbr.rel (0) target = $region33
    $region32: #{tpu_custom_call.1} parent=1 // pred_region
      %74 = dma.done [#allocation5], 256
    $region33: #{tpu_custom_call.1} parent=1 // pred_fallthru
      _
    // Predicated region
    $region34: #{tpu_custom_call.1} parent=1 // pred_check
      _
    $region35: #{tpu_custom_call.1} parent=1 // pred_check_branch
      %76 = sbr.rel (0) target = $region37
    $region36: #{tpu_custom_call.1} parent=1 // pred_region
      %78 = dma.done [#allocation8], 256
    $region37: #{tpu_custom_call.1} parent=1 // pred_fallthru
      _
    // Predicated region
    $region38: #{tpu_custom_call.1} parent=1 // pred_check
      _
    $region39: #{tpu_custom_call.1} parent=1 // pred_check_branch
      %80 = sbr.rel (0) target = $region41
    $region40: #{tpu_custom_call.1} parent=1 // pred_region
      %82 = dma.done [#allocation8], 256
    $region41: #{tpu_custom_call.1} parent=1 // pred_fallthru
      _
    %s84 = smul.u32 0, 2
    %v85 = vld [vmem:[%s1] sm:$0xff]
    %v86 = vld [vmem:[%s1 + $0x8] sm:$0xff]
    %v87 = vpack.c.bf16 %v86, %v85
    %v88 = vld [vmem:[#allocation4] sm:$0xf]
    %v89 = vld [vmem:[#allocation4 + $0x4] sm:$0xf]
    %v90 = vld [vmem:[#allocation4 + $0x8] sm:$0xf]
    %v91 = vld [vmem:[#allocation4 + $0xc] sm:$0xf]
    %v92 = vld [vmem:[%s7] sm:$0x1]
    %v93 = vperm.slane %v92, 0
    %v98 = vunpack.c.l.b16 %v88
    %v99 = vunpack.c.l.b16 %v89
    %v100 = vunpack.c.l.b16 %v90
    %v101 = vunpack.c.l.b16 %v91
    %v102 = vpack.c.b16 %v99, %v98
    %v103 = vpack.c.b16 %v101, %v100
    %vm106 = vcmask 261120
    %v108 = vsel %vm106, %v87, 0
    %110 = vmatpush.bf16.msra.mxu0 0
    %111 = vmatpush.bf16.msra.mxu0 0
    %112 = vmatpush.bf16.msra.mxu0 0
    %113 = vmatpush.bf16.msra.mxu0 0
    %114 = vmatpush.bf16.msra.mxu0 0
    %115 = vmatpush.bf16.msra.mxu0 0
    %116 = vmatpush.bf16.msra.mxu0 %v103
    %117 = vmatpush.bf16.msra.mxu0 %v102
    %118 = vmatmul.bf16.gmra.mxu0 %v108
    %v119 = vpop.f32.mrf.mxu0
    %v120 = vadd.f32 %v93, %v119
    %v121 = vpop.f32.mrf.mxu0
    %v122 = vadd.f32 %v93, %v121
    %123 = vdwg.mxu0
    %v124 = vmax.f32 %v120, 0.0
    %v125 = vmax.f32 %v122, 0.0
    %v126 = vpack.c.bf16 %v125, %v124
    %v127 = vld [vmem:[#allocation7] sm:$0xf]
    %v128 = vld [vmem:[#allocation7 + $0x4] sm:$0xf]
    %v129 = vld [vmem:[#allocation7 + $0x8] sm:$0xf]
    %v130 = vld [vmem:[#allocation7 + $0xc] sm:$0xf]
    %v135 = vunpack.c.l.b16 %v127
    %v136 = vunpack.c.l.b16 %v128
    %v137 = vunpack.c.l.b16 %v129
    %v138 = vunpack.c.l.b16 %v130
    %v139 = vpack.c.b16 %v136, %v135
    %v140 = vpack.c.b16 %v138, %v137
    %v144 = vsel %vm106, %v126, 0
    %146 = vmatpush.bf16.msra.mxu0 0
    %147 = vmatpush.bf16.msra.mxu0 0
    %148 = vmatpush.bf16.msra.mxu0 0
    %149 = vmatpush.bf16.msra.mxu0 0
    %150 = vmatpush.bf16.msra.mxu0 0
    %151 = vmatpush.bf16.msra.mxu0 0
    %152 = vmatpush.bf16.msra.mxu0 %v140
    %153 = vmatpush.bf16.msra.mxu0 %v139
    %154 = vmatmul.bf16.gmra.mxu0 %v144
    %v155 = vpop.f32.mrf.mxu0
    %v156 = vadd.f32 0.0, %v155
    %v157 = vpop.f32.mrf.mxu0
    %v158 = vadd.f32 0.0, %v157
    %159 = vdwg.mxu0
    %v160 = vlaneseq
    %v161 = vand.u32 %v160, 127
    %s162 = sld [smem:[#allocation3 + %s84]]
    %v163 = vstv %s162
    %s164 = sadd.s32 %s84, 1
    %s165 = sld [smem:[#allocation3 + %s164]]
    %v166 = vstv %s165
    %vm167 = vcmp.lt.s32.totalorder %v161, %v163
    %vm168 = vcmp.lt.s32.totalorder %v161, %v166
    %v169 = vpack.c.bf16 %v156, %v156
    %v170 = vpack.c.bf16 %v158, %v158
    %v172 = vunpack.c.l.b16 %v169
    %v173 = vpack.c.b16 %v172, %v172
    %174 = vrot.lane.b32.xlu0 %v173, 96
    %v175 = vpop.permute.xlu0 %174
    %vm176 = vcmask 64512
    %v178 = vsel %vm176, %v169, 0
    %v181 = vsel %vm176, %v175, 0
    %183 = vmatpush.bf16.xpose.msra.mxu0 0
    %184 = vmatpush.bf16.xpose.msra.mxu0 0
    %185 = vmatpush.bf16.xpose.msra.mxu0 0
    %186 = vmatpush.bf16.xpose.msra.mxu0 0
    %187 = vmatpush.bf16.xpose.msra.mxu0 0
    %188 = vmatpush.bf16.xpose.msra.mxu0 0
    %189 = vmatpush.bf16.xpose.msra.mxu0 0
    %190 = vmatpush.bf16.xpose.msra.mxu0 %v181
    %191 = vmatmul.bf16.gmra.mxu0 %v178
    %v192 = vpop.f32.mrf.mxu0
    %v193 = vadd.f32 0.0, %v192
    %v194 = vpop.f32.mrf.mxu0
    %195 = vdwg.mxu0
    %v197 = vunpack.c.l.b16 %v170
    %v198 = vpack.c.b16 %v197, %v197
    %199 = vrot.lane.b32.xlu0 %v198, 96
    %v200 = vpop.permute.xlu0 %199
    %v202 = vsel %vm176, %v170, 0
    %v205 = vsel %vm176, %v200, 0
    %207 = vmatpush.bf16.xpose.msra.mxu0 0
    %208 = vmatpush.bf16.xpose.msra.mxu0 0
    %209 = vmatpush.bf16.xpose.msra.mxu0 0
    %210 = vmatpush.bf16.xpose.msra.mxu0 0
    %211 = vmatpush.bf16.xpose.msra.mxu0 0
    %212 = vmatpush.bf16.xpose.msra.mxu0 0
    %213 = vmatpush.bf16.xpose.msra.mxu0 0
    %214 = vmatpush.bf16.xpose.msra.mxu0 %v205
    %215 = vmatmul.bf16.gmra.mxu0 %v202
    %v216 = vpop.f32.mrf.mxu0
    %v217 = vadd.f32 0.0, %v216
    %v218 = vpop.f32.mrf.mxu0
    %219 = vdwg.mxu0
    %v220 = vmul.f32 %v193, 0.35355338
    %v221 = vmul.f32 %v217, 0.35355338
    %v222 = vpack.c.bf16 %v158, %v156
    %v223 = vld [vmem:[%s5] sm:$0xf]
    %v225 = vsel %vm176, %v222, 0
    %vm227 = vcmask 1043456
    %v229 = vsel %vm227, %v223, 0
    %231 = vmatpush.bf16.msra.mxu0 0
    %232 = vmatpush.bf16.msra.mxu0 0
    %233 = vmatpush.bf16.msra.mxu0 0
    %234 = vmatpush.bf16.msra.mxu0 0
    %235 = vmatpush.bf16.msra.mxu0 0
    %236 = vmatpush.bf16.msra.mxu0 0
    %237 = vmatpush.bf16.msra.mxu0 0
    %238 = vmatpush.bf16.msra.mxu0 %v229
    %239 = vmatmul.bf16.gmra.mxu0 %v225
    %v240 = vpop.f32.mrf.mxu0
    %v241 = vadd.f32 0.0, %v240
    %v242 = vpop.f32.mrf.mxu0
    %v243 = vadd.f32 0.0, %v242
    %244 = vdwg.mxu0
    %v245 = vmul.f32 %v241, 0.35355338
    %v246 = vmul.f32 %v243, 0.35355338
    %v247 = vsel %vm167, %v220, -inf
    %v248 = vsel %vm168, %v221, -inf
    %v249 = vsel %vm176, %v247, -inf
    %250 = vmax.xlane.f32.xlu0 %v249
    %v251 = vpop.xlane.xlu0 %250
    %v252 = vsel %vm176, %v248, -inf
    %253 = vmax.xlane.f32.xlu0 %v252
    %v254 = vpop.xlane.xlu0 %253
    %vm255 = vcmask 31744
    %v256 = vsel %vm255, %v245, -inf
    %257 = vmax.xlane.f32.xlu0 %v256
    %v258 = vpop.xlane.xlu0 %257
    %v259 = vsel %vm255, %v246, -inf
    %260 = vmax.xlane.f32.xlu0 %v259
    %v261 = vpop.xlane.xlu0 %260
    %v262 = vmax.f32 %v251, %v258
    %v263 = vmax.f32 %v254, %v261
    %v264 = vsub.f32 %v247, %v262
    %v265 = vsub.f32 %v248, %v263
    %v266 = vmul.f32 %v264, 1.442695
    %v267 = vpow.pop %v266
    %v268 = vmul.f32 %v265, 1.442695
    %v269 = vpow.pop %v268
    %v270 = vsub.f32 %v245, %v262
    %v271 = vsub.f32 %v246, %v263
    %v272 = vmul.f32 %v270, 1.442695
    %v273 = vpow.pop %v272
    %v274 = vmul.f32 %v271, 1.442695
    %v275 = vpow.pop %v274
    %v276 = vsel %vm176, %v267, 0.0
    %277 = vadd.xlane.f32.xlu0 %v276
    %v278 = vpop.xlane.xlu0 %277
    %v279 = vsel %vm176, %v269, 0.0
    %280 = vadd.xlane.f32.xlu0 %v279
    %v281 = vpop.xlane.xlu0 %280
    %v282 = vsel %vm255, %v273, 0.0
    %283 = vadd.xlane.f32.xlu0 %v282
    %v284 = vpop.xlane.xlu0 %283
    %v285 = vsel %vm255, %v275, 0.0
    %286 = vadd.xlane.f32.xlu0 %v285
    %v287 = vpop.xlane.xlu0 %286
    %v288 = vadd.f32 %v278, %v284
    %v289 = vadd.f32 %v281, %v287
    %v290 = vrcp.pop %v288
    %v291 = vrcp.pop %v289
    %v292 = vmul.f32 %v267, %v290
    %v293 = vmul.f32 %v269, %v291
    %v294 = vpack.c.bf16 %v292, %v292
    %v295 = vpack.c.bf16 %v293, %v293
    %v296 = vmul.f32 %v273, %v290
    %v297 = vmul.f32 %v275, %v291
    %v298 = vpack.c.bf16 %v297, %v296
    %299 = vrot.lane.b32.xlu0 %v173, 64
    %v300 = vpop.permute.xlu0 %299
    %v302 = vsel %vm176, %v294, 0
    %v305 = vsel %vm227, %v300, 0
    %307 = vmatpush.bf16.msra.mxu0 0
    %308 = vmatpush.bf16.msra.mxu0 0
    %309 = vmatpush.bf16.msra.mxu0 0
    %310 = vmatpush.bf16.msra.mxu0 0
    %311 = vmatpush.bf16.msra.mxu0 0
    %312 = vmatpush.bf16.msra.mxu0 0
    %313 = vmatpush.bf16.msra.mxu0 0
    %314 = vmatpush.bf16.msra.mxu0 %v305
    %315 = vmatmul.bf16.gmra.mxu0 %v302
    %v316 = vpop.f32.mrf.mxu0
    %v317 = vadd.f32 0.0, %v316
    %v318 = vpop.f32.mrf.mxu0
    %319 = vdwg.mxu0
    %320 = vrot.lane.b32.xlu0 %v198, 64
    %v321 = vpop.permute.xlu0 %320
    %v323 = vsel %vm176, %v295, 0
    %v326 = vsel %vm227, %v321, 0
    %328 = vmatpush.bf16.msra.mxu0 0
    %329 = vmatpush.bf16.msra.mxu0 0
    %330 = vmatpush.bf16.msra.mxu0 0
    %331 = vmatpush.bf16.msra.mxu0 0
    %332 = vmatpush.bf16.msra.mxu0 0
    %333 = vmatpush.bf16.msra.mxu0 0
    %334 = vmatpush.bf16.msra.mxu0 0
    %335 = vmatpush.bf16.msra.mxu0 %v326
    %336 = vmatmul.bf16.gmra.mxu0 %v323
    %v337 = vpop.f32.mrf.mxu0
    %v338 = vadd.f32 0.0, %v337
    %v339 = vpop.f32.mrf.mxu0
    %340 = vdwg.mxu0
    %v341 = vld [vmem:[%s6] sm:$0x3]
    %v343 = vsel %vm255, %v298, 0
    %vm345 = vcmask 1041408
    %v347 = vsel %vm345, %v341, 0
    %349 = vmatpush.bf16.msra.mxu0 0
    %350 = vmatpush.bf16.msra.mxu0 0
    %351 = vmatpush.bf16.msra.mxu0 0
    %352 = vmatpush.bf16.msra.mxu0 0
    %353 = vmatpush.bf16.msra.mxu0 0
    %354 = vmatpush.bf16.msra.mxu0 0
    %355 = vmatpush.bf16.msra.mxu0 0
    %356 = vmatpush.bf16.msra.mxu0 %v347
    %357 = vmatmul.bf16.gmra.mxu0 %v343
    %v358 = vpop.f32.mrf.mxu0
    %v359 = vadd.f32 0.0, %v358
    %v360 = vpop.f32.mrf.mxu0
    %v361 = vadd.f32 0.0, %v360
    %362 = vdwg.mxu0
    %v363 = vadd.f32 %v317, %v359
    %v364 = vadd.f32 %v338, %v361
    %365 = vrot.lane.b32.xlu0 %v173, 120
    %v366 = vpop.permute.xlu0 %365
    %367 = vrot.lane.b32.xlu0 %v173, 88
    %v368 = vpop.permute.xlu0 %367
    %v370 = vsel %vm176, %v366, 0
    %v373 = vsel %vm176, %v368, 0
    %375 = vmatpush.bf16.xpose.msra.mxu0 0
    %376 = vmatpush.bf16.xpose.msra.mxu0 0
    %377 = vmatpush.bf16.xpose.msra.mxu0 0
    %378 = vmatpush.bf16.xpose.msra.mxu0 0
    %379 = vmatpush.bf16.xpose.msra.mxu0 0
    %380 = vmatpush.bf16.xpose.msra.mxu0 0
    %381 = vmatpush.bf16.xpose.msra.mxu0 0
    %382 = vmatpush.bf16.xpose.msra.mxu0 %v373
    %383 = vmatmul.bf16.gmra.mxu0 %v370
    %v384 = vpop.f32.mrf.mxu0
    %v385 = vadd.f32 0.0, %v384
    %v386 = vpop.f32.mrf.mxu0
    %387 = vdwg.mxu0
    %388 = vrot.lane.b32.xlu0 %v198, 120
    %v389 = vpop.permute.xlu0 %388
    %390 = vrot.lane.b32.xlu0 %v198, 88
    %v391 = vpop.permute.xlu0 %390
    %v393 = vsel %vm176, %v389, 0
    %v396 = vsel %vm176, %v391, 0
    %398 = vmatpush.bf16.xpose.msra.mxu0 0
    %399 = vmatpush.bf16.xpose.msra.mxu0 0
    %400 = vmatpush.bf16.xpose.msra.mxu0 0
    %401 = vmatpush.bf16.xpose.msra.mxu0 0
    %402 = vmatpush.bf16.xpose.msra.mxu0 0
    %403 = vmatpush.bf16.xpose.msra.mxu0 0
    %404 = vmatpush.bf16.xpose.msra.mxu0 0
    %405 = vmatpush.bf16.xpose.msra.mxu0 %v396
    %406 = vmatmul.bf16.gmra.mxu0 %v393
    %v407 = vpop.f32.mrf.mxu0
    %v408 = vadd.f32 0.0, %v407
    %v409 = vpop.f32.mrf.mxu0
    %410 = vdwg.mxu0
    %v411 = vmul.f32 %v385, 0.35355338
    %v412 = vmul.f32 %v408, 0.35355338
    %s413 = scalar_lea.vmem %s5, 4
    %v414 = vld [vmem:[%s413] sm:$0xf]
    %416 = vrot.lane.b32.xlu0 %v222, 120
    %v417 = vpop.permute.xlu0 %416
    %v419 = vsel %vm176, %v417, 0
    %v422 = vsel %vm227, %v414, 0
    %424 = vmatpush.bf16.msra.mxu0 0
    %425 = vmatpush.bf16.msra.mxu0 0
    %426 = vmatpush.bf16.msra.mxu0 0
    %427 = vmatpush.bf16.msra.mxu0 0
    %428 = vmatpush.bf16.msra.mxu0 0
    %429 = vmatpush.bf16.msra.mxu0 0
    %430 = vmatpush.bf16.msra.mxu0 0
    %431 = vmatpush.bf16.msra.mxu0 %v422
    %432 = vmatmul.bf16.gmra.mxu0 %v419
    %v433 = vpop.f32.mrf.mxu0
    %v434 = vadd.f32 0.0, %v433
    %v435 = vpop.f32.mrf.mxu0
    %v436 = vadd.f32 0.0, %v435
    %437 = vdwg.mxu0
    %v438 = vmul.f32 %v434, 0.35355338
    %v439 = vmul.f32 %v436, 0.35355338
    %v440 = vsel %vm167, %v411, -inf
    %v441 = vsel %vm168, %v412, -inf
    %v442 = vsel %vm176, %v440, -inf
    %443 = vmax.xlane.f32.xlu0 %v442
    %v444 = vpop.xlane.xlu0 %443
    %v445 = vsel %vm176, %v441, -inf
    %446 = vmax.xlane.f32.xlu0 %v445
    %v447 = vpop.xlane.xlu0 %446
    %v448 = vsel %vm255, %v438, -inf
    %449 = vmax.xlane.f32.xlu0 %v448
    %v450 = vpop.xlane.xlu0 %449
    %v451 = vsel %vm255, %v439, -inf
    %452 = vmax.xlane.f32.xlu0 %v451
    %v453 = vpop.xlane.xlu0 %452
    %v454 = vmax.f32 %v444, %v450
    %v455 = vmax.f32 %v447, %v453
    %v456 = vsub.f32 %v440, %v454
    %v457 = vsub.f32 %v441, %v455
    %v458 = vmul.f32 %v456, 1.442695
    %v459 = vpow.pop %v458
    %v460 = vmul.f32 %v457, 1.442695
    %v461 = vpow.pop %v460
    %v462 = vsub.f32 %v438, %v454
    %v463 = vsub.f32 %v439, %v455
    %v464 = vmul.f32 %v462, 1.442695
    %v465 = vpow.pop %v464
    %v466 = vmul.f32 %v463, 1.442695
    %v467 = vpow.pop %v466
    %v468 = vsel %vm176, %v459, 0.0
    %469 = vadd.xlane.f32.xlu0 %v468
    %v470 = vpop.xlane.xlu0 %469
    %v471 = vsel %vm176, %v461, 0.0
    %472 = vadd.xlane.f32.xlu0 %v471
    %v473 = vpop.xlane.xlu0 %472
    %v474 = vsel %vm255, %v465, 0.0
    %475 = vadd.xlane.f32.xlu0 %v474
    %v476 = vpop.xlane.xlu0 %475
    %v477 = vsel %vm255, %v467, 0.0
    %478 = vadd.xlane.f32.xlu0 %v477
    %v479 = vpop.xlane.xlu0 %478
    %v480 = vadd.f32 %v470, %v476
    %v481 = vadd.f32 %v473, %v479
    %v482 = vrcp.pop %v480
    %v483 = vrcp.pop %v481
    %v484 = vmul.f32 %v459, %v482
    %v485 = vmul.f32 %v461, %v483
    %v486 = vpack.c.bf16 %v484, %v484
    %v487 = vpack.c.bf16 %v485, %v485
    %v488 = vmul.f32 %v465, %v482
    %v489 = vmul.f32 %v467, %v483
    %v490 = vpack.c.bf16 %v489, %v488
    %491 = vrot.lane.b32.xlu0 %v173, 56
    %v492 = vpop.permute.xlu0 %491
    %v494 = vsel %vm176, %v486, 0
    %v497 = vsel %vm227, %v492, 0
    %499 = vmatpush.bf16.msra.mxu0 0
    %500 = vmatpush.bf16.msra.mxu0 0
    %501 = vmatpush.bf16.msra.mxu0 0
    %502 = vmatpush.bf16.msra.mxu0 0
    %503 = vmatpush.bf16.msra.mxu0 0
    %504 = vmatpush.bf16.msra.mxu0 0
    %505 = vmatpush.bf16.msra.mxu0 0
    %506 = vmatpush.bf16.msra.mxu0 %v497
    %507 = vmatmul.bf16.gmra.mxu0 %v494
    %v508 = vpop.f32.mrf.mxu0
    %v509 = vadd.f32 0.0, %v508
    %v510 = vpop.f32.mrf.mxu0
    %511 = vdwg.mxu0
    %512 = vrot.lane.b32.xlu0 %v198, 56
    %v513 = vpop.permute.xlu0 %512
    %v515 = vsel %vm176, %v487, 0
    %v518 = vsel %vm227, %v513, 0
    %520 = vmatpush.bf16.msra.mxu0 0
    %521 = vmatpush.bf16.msra.mxu0 0
    %522 = vmatpush.bf16.msra.mxu0 0
    %523 = vmatpush.bf16.msra.mxu0 0
    %524 = vmatpush.bf16.msra.mxu0 0
    %525 = vmatpush.bf16.msra.mxu0 0
    %526 = vmatpush.bf16.msra.mxu0 0
    %527 = vmatpush.bf16.msra.mxu0 %v518
    %528 = vmatmul.bf16.gmra.mxu0 %v515
    %v529 = vpop.f32.mrf.mxu0
    %v530 = vadd.f32 0.0, %v529
    %v531 = vpop.f32.mrf.mxu0
    %532 = vdwg.mxu0
    %s533 = scalar_lea.vmem %s6, 2
    %v534 = vld [vmem:[%s533] sm:$0x3]
    %v536 = vsel %vm255, %v490, 0
    %v539 = vsel %vm345, %v534, 0
    %541 = vmatpush.bf16.msra.mxu0 0
    %542 = vmatpush.bf16.msra.mxu0 0
    %543 = vmatpush.bf16.msra.mxu0 0
    %544 = vmatpush.bf16.msra.mxu0 0
    %545 = vmatpush.bf16.msra.mxu0 0
    %546 = vmatpush.bf16.msra.mxu0 0
    %547 = vmatpush.bf16.msra.mxu0 0
    %548 = vmatpush.bf16.msra.mxu0 %v539
    %549 = vmatmul.bf16.gmra.mxu0 %v536
    %v550 = vpop.f32.mrf.mxu0
    %v551 = vadd.f32 0.0, %v550
    %v552 = vpop.f32.mrf.mxu0
    %v553 = vadd.f32 0.0, %v552
    %554 = vdwg.mxu0
    %v555 = vadd.f32 %v509, %v551
    %v556 = vadd.f32 %v530, %v553
    %557 = vrot.lane.b32.xlu0 %v173, 112
    %v558 = vpop.permute.xlu0 %557
    %559 = vrot.lane.b32.xlu0 %v173, 80
    %v560 = vpop.permute.xlu0 %559
    %v562 = vsel %vm176, %v558, 0
    %v565 = vsel %vm176, %v560, 0
    %567 = vmatpush.bf16.xpose.msra.mxu0 0
    %568 = vmatpush.bf16.xpose.msra.mxu0 0
    %569 = vmatpush.bf16.xpose.msra.mxu0 0
    %570 = vmatpush.bf16.xpose.msra.mxu0 0
    %571 = vmatpush.bf16.xpose.msra.mxu0 0
    %572 = vmatpush.bf16.xpose.msra.mxu0 0
    %573 = vmatpush.bf16.xpose.msra.mxu0 0
    %574 = vmatpush.bf16.xpose.msra.mxu0 %v565
    %575 = vmatmul.bf16.gmra.mxu0 %v562
    %v576 = vpop.f32.mrf.mxu0
    %v577 = vadd.f32 0.0, %v576
    %v578 = vpop.f32.mrf.mxu0
    %579 = vdwg.mxu0
    %580 = vrot.lane.b32.xlu0 %v198, 112
    %v581 = vpop.permute.xlu0 %580
    %582 = vrot.lane.b32.xlu0 %v198, 80
    %v583 = vpop.permute.xlu0 %582
    %v585 = vsel %vm176, %v581, 0
    %v588 = vsel %vm176, %v583, 0
    %590 = vmatpush.bf16.xpose.msra.mxu0 0
    %591 = vmatpush.bf16.xpose.msra.mxu0 0
    %592 = vmatpush.bf16.xpose.msra.mxu0 0
    %593 = vmatpush.bf16.xpose.msra.mxu0 0
    %594 = vmatpush.bf16.xpose.msra.mxu0 0
    %595 = vmatpush.bf16.xpose.msra.mxu0 0
    %596 = vmatpush.bf16.xpose.msra.mxu0 0
    %597 = vmatpush.bf16.xpose.msra.mxu0 %v588
    %598 = vmatmul.bf16.gmra.mxu0 %v585
    %v599 = vpop.f32.mrf.mxu0
    %v600 = vadd.f32 0.0, %v599
    %v601 = vpop.f32.mrf.mxu0
    %602 = vdwg.mxu0
    %v603 = vmul.f32 %v577, 0.35355338
    %v604 = vmul.f32 %v600, 0.35355338
    %s605 = scalar_lea.vmem %s5, 8
    %v606 = vld [vmem:[%s605] sm:$0xf]
    %607 = vrot.lane.b32.xlu0 %v222, 112
    %v608 = vpop.permute.xlu0 %607
    %v610 = vsel %vm176, %v608, 0
    %v613 = vsel %vm227, %v606, 0
    %615 = vmatpush.bf16.msra.mxu0 0
    %616 = vmatpush.bf16.msra.mxu0 0
    %617 = vmatpush.bf16.msra.mxu0 0
    %618 = vmatpush.bf16.msra.mxu0 0
    %619 = vmatpush.bf16.msra.mxu0 0
    %620 = vmatpush.bf16.msra.mxu0 0
    %621 = vmatpush.bf16.msra.mxu0 0
    %622 = vmatpush.bf16.msra.mxu0 %v613
    %623 = vmatmul.bf16.gmra.mxu0 %v610
    %v624 = vpop.f32.mrf.mxu0
    %v625 = vadd.f32 0.0, %v624
    %v626 = vpop.f32.mrf.mxu0
    %v627 = vadd.f32 0.0, %v626
    %628 = vdwg.mxu0
    %v629 = vmul.f32 %v625, 0.35355338
    %v630 = vmul.f32 %v627, 0.35355338
    %v631 = vsel %vm167, %v603, -inf
    %v632 = vsel %vm168, %v604, -inf
    %v633 = vsel %vm176, %v631, -inf
    %634 = vmax.xlane.f32.xlu0 %v633
    %v635 = vpop.xlane.xlu0 %634
    %v636 = vsel %vm176, %v632, -inf
    %637 = vmax.xlane.f32.xlu0 %v636
    %v638 = vpop.xlane.xlu0 %637
    %v639 = vsel %vm255, %v629, -inf
    %640 = vmax.xlane.f32.xlu0 %v639
    %v641 = vpop.xlane.xlu0 %640
    %v642 = vsel %vm255, %v630, -inf
    %643 = vmax.xlane.f32.xlu0 %v642
    %v644 = vpop.xlane.xlu0 %643
    %v645 = vmax.f32 %v635, %v641
    %v646 = vmax.f32 %v638, %v644
    %v647 = vsub.f32 %v631, %v645
    %v648 = vsub.f32 %v632, %v646
    %v649 = vmul.f32 %v647, 1.442695
    %v650 = vpow.pop %v649
    %v651 = vmul.f32 %v648, 1.442695
    %v652 = vpow.pop %v651
    %v653 = vsub.f32 %v629, %v645
    %v654 = vsub.f32 %v630, %v646
    %v655 = vmul.f32 %v653, 1.442695
    %v656 = vpow.pop %v655
    %v657 = vmul.f32 %v654, 1.442695
    %v658 = vpow.pop %v657
    %v659 = vsel %vm176, %v650, 0.0
    %660 = vadd.xlane.f32.xlu0 %v659
    %v661 = vpop.xlane.xlu0 %660
    %v662 = vsel %vm176, %v652, 0.0
    %663 = vadd.xlane.f32.xlu0 %v662
    %v664 = vpop.xlane.xlu0 %663
    %v665 = vsel %vm255, %v656, 0.0
    %666 = vadd.xlane.f32.xlu0 %v665
    %v667 = vpop.xlane.xlu0 %666
    %v668 = vsel %vm255, %v658, 0.0
    %669 = vadd.xlane.f32.xlu0 %v668
    %v670 = vpop.xlane.xlu0 %669
    %v671 = vadd.f32 %v661, %v667
    %v672 = vadd.f32 %v664, %v670
    %v673 = vrcp.pop %v671
    %v674 = vrcp.pop %v672
    %v675 = vmul.f32 %v650, %v673
    %v676 = vmul.f32 %v652, %v674
    %v677 = vpack.c.bf16 %v675, %v675
    %v678 = vpack.c.bf16 %v676, %v676
    %v679 = vmul.f32 %v656, %v673
    %v680 = vmul.f32 %v658, %v674
    %v681 = vpack.c.bf16 %v680, %v679
    %682 = vrot.lane.b32.xlu0 %v173, 48
    %v683 = vpop.permute.xlu0 %682
    %v685 = vsel %vm176, %v677, 0
    %v688 = vsel %vm227, %v683, 0
    %690 = vmatpush.bf16.msra.mxu0 0
    %691 = vmatpush.bf16.msra.mxu0 0
    %692 = vmatpush.bf16.msra.mxu0 0
    %693 = vmatpush.bf16.msra.mxu0 0
    %694 = vmatpush.bf16.msra.mxu0 0
    %695 = vmatpush.bf16.msra.mxu0 0
    %696 = vmatpush.bf16.msra.mxu0 0
    %697 = vmatpush.bf16.msra.mxu0 %v688
    %698 = vmatmul.bf16.gmra.mxu0 %v685
    %v699 = vpop.f32.mrf.mxu0
    %v700 = vadd.f32 0.0, %v699
    %v701 = vpop.f32.mrf.mxu0
    %702 = vdwg.mxu0
    %703 = vrot.lane.b32.xlu0 %v198, 48
    %v704 = vpop.permute.xlu0 %703
    %v706 = vsel %vm176, %v678, 0
    %v709 = vsel %vm227, %v704, 0
    %711 = vmatpush.bf16.msra.mxu0 0
    %712 = vmatpush.bf16.msra.mxu0 0
    %713 = vmatpush.bf16.msra.mxu0 0
    %714 = vmatpush.bf16.msra.mxu0 0
    %715 = vmatpush.bf16.msra.mxu0 0
    %716 = vmatpush.bf16.msra.mxu0 0
    %717 = vmatpush.bf16.msra.mxu0 0
    %718 = vmatpush.bf16.msra.mxu0 %v709
    %719 = vmatmul.bf16.gmra.mxu0 %v706
    %v720 = vpop.f32.mrf.mxu0
    %v721 = vadd.f32 0.0, %v720
    %v722 = vpop.f32.mrf.mxu0
    %723 = vdwg.mxu0
    %s724 = scalar_lea.vmem %s6, 4
    %v725 = vld [vmem:[%s724] sm:$0x3]
    %v727 = vsel %vm255, %v681, 0
    %v730 = vsel %vm345, %v725, 0
    %732 = vmatpush.bf16.msra.mxu0 0
    %733 = vmatpush.bf16.msra.mxu0 0
    %734 = vmatpush.bf16.msra.mxu0 0
    %735 = vmatpush.bf16.msra.mxu0 0
    %736 = vmatpush.bf16.msra.mxu0 0
    %737 = vmatpush.bf16.msra.mxu0 0
    %738 = vmatpush.bf16.msra.mxu0 0
    %739 = vmatpush.bf16.msra.mxu0 %v730
    %740 = vmatmul.bf16.gmra.mxu0 %v727
    %v741 = vpop.f32.mrf.mxu0
    %v742 = vadd.f32 0.0, %v741
    %v743 = vpop.f32.mrf.mxu0
    %v744 = vadd.f32 0.0, %v743
    %745 = vdwg.mxu0
    %v746 = vadd.f32 %v700, %v742
    %v747 = vadd.f32 %v721, %v744
    %748 = vrot.lane.b32.xlu0 %v173, 104
    %v749 = vpop.permute.xlu0 %748
    %750 = vrot.lane.b32.xlu0 %v173, 72
    %v751 = vpop.permute.xlu0 %750
    %v753 = vsel %vm176, %v749, 0
    %v756 = vsel %vm176, %v751, 0
    %758 = vmatpush.bf16.xpose.msra.mxu0 0
    %759 = vmatpush.bf16.xpose.msra.mxu0 0
    %760 = vmatpush.bf16.xpose.msra.mxu0 0
    %761 = vmatpush.bf16.xpose.msra.mxu0 0
    %762 = vmatpush.bf16.xpose.msra.mxu0 0
    %763 = vmatpush.bf16.xpose.msra.mxu0 0
    %764 = vmatpush.bf16.xpose.msra.mxu0 0
    %765 = vmatpush.bf16.xpose.msra.mxu0 %v756
    %766 = vmatmul.bf16.gmra.mxu0 %v753
    %v767 = vpop.f32.mrf.mxu0
    %v768 = vadd.f32 0.0, %v767
    %v769 = vpop.f32.mrf.mxu0
    %770 = vdwg.mxu0
    %771 = vrot.lane.b32.xlu0 %v198, 104
    %v772 = vpop.permute.xlu0 %771
    %773 = vrot.lane.b32.xlu0 %v198, 72
    %v774 = vpop.permute.xlu0 %773
    %v776 = vsel %vm176, %v772, 0
    %v779 = vsel %vm176, %v774, 0
    %781 = vmatpush.bf16.xpose.msra.mxu0 0
    %782 = vmatpush.bf16.xpose.msra.mxu0 0
    %783 = vmatpush.bf16.xpose.msra.mxu0 0
    %784 = vmatpush.bf16.xpose.msra.mxu0 0
    %785 = vmatpush.bf16.xpose.msra.mxu0 0
    %786 = vmatpush.bf16.xpose.msra.mxu0 0
    %787 = vmatpush.bf16.xpose.msra.mxu0 0
    %788 = vmatpush.bf16.xpose.msra.mxu0 %v779
    %789 = vmatmul.bf16.gmra.mxu0 %v776
    %v790 = vpop.f32.mrf.mxu0
    %v791 = vadd.f32 0.0, %v790
    %v792 = vpop.f32.mrf.mxu0
    %793 = vdwg.mxu0
    %v794 = vmul.f32 %v768, 0.35355338
    %v795 = vmul.f32 %v791, 0.35355338
    %s796 = scalar_lea.vmem %s5, 12
    %v797 = vld [vmem:[%s796] sm:$0xf]
    %798 = vrot.lane.b32.xlu0 %v222, 104
    %v799 = vpop.permute.xlu0 %798
    %v801 = vsel %vm176, %v799, 0
    %v804 = vsel %vm227, %v797, 0
    %806 = vmatpush.bf16.msra.mxu0 0
    %807 = vmatpush.bf16.msra.mxu0 0
    %808 = vmatpush.bf16.msra.mxu0 0
    %809 = vmatpush.bf16.msra.mxu0 0
    %810 = vmatpush.bf16.msra.mxu0 0
    %811 = vmatpush.bf16.msra.mxu0 0
    %812 = vmatpush.bf16.msra.mxu0 0
    %813 = vmatpush.bf16.msra.mxu0 %v804
    %814 = vmatmul.bf16.gmra.mxu0 %v801
    %v815 = vpop.f32.mrf.mxu0
    %v816 = vadd.f32 0.0, %v815
    %v817 = vpop.f32.mrf.mxu0
    %v818 = vadd.f32 0.0, %v817
    %819 = vdwg.mxu0
    %v820 = vmul.f32 %v816, 0.35355338
    %v821 = vmul.f32 %v818, 0.35355338
    %v822 = vsel %vm167, %v794, -inf
    %v823 = vsel %vm168, %v795, -inf
    %v824 = vsel %vm176, %v822, -inf
    %825 = vmax.xlane.f32.xlu0 %v824
    %v826 = vpop.xlane.xlu0 %825
    %v827 = vsel %vm176, %v823, -inf
    %828 = vmax.xlane.f32.xlu0 %v827
    %v829 = vpop.xlane.xlu0 %828
    %v830 = vsel %vm255, %v820, -inf
    %831 = vmax.xlane.f32.xlu0 %v830
    %v832 = vpop.xlane.xlu0 %831
    %v833 = vsel %vm255, %v821, -inf
    %834 = vmax.xlane.f32.xlu0 %v833
    %v835 = vpop.xlane.xlu0 %834
    %v836 = vmax.f32 %v826, %v832
    %v837 = vmax.f32 %v829, %v835
    %v838 = vsub.f32 %v822, %v836
    %v839 = vsub.f32 %v823, %v837
    %v840 = vmul.f32 %v838, 1.442695
    %v841 = vpow.pop %v840
    %v842 = vmul.f32 %v839, 1.442695
    %v843 = vpow.pop %v842
    %v844 = vsub.f32 %v820, %v836
    %v845 = vsub.f32 %v821, %v837
    %v846 = vmul.f32 %v844, 1.442695
    %v847 = vpow.pop %v846
    %v848 = vmul.f32 %v845, 1.442695
    %v849 = vpow.pop %v848
    %v850 = vsel %vm176, %v841, 0.0
    %851 = vadd.xlane.f32.xlu0 %v850
    %v852 = vpop.xlane.xlu0 %851
    %v853 = vsel %vm176, %v843, 0.0
    %854 = vadd.xlane.f32.xlu0 %v853
    %v855 = vpop.xlane.xlu0 %854
    %v856 = vsel %vm255, %v847, 0.0
    %857 = vadd.xlane.f32.xlu0 %v856
    %v858 = vpop.xlane.xlu0 %857
    %v859 = vsel %vm255, %v849, 0.0
    %860 = vadd.xlane.f32.xlu0 %v859
    %v861 = vpop.xlane.xlu0 %860
    %v862 = vadd.f32 %v852, %v858
    %v863 = vadd.f32 %v855, %v861
    %v864 = vrcp.pop %v862
    %v865 = vrcp.pop %v863
    %v866 = vmul.f32 %v841, %v864
    %v867 = vmul.f32 %v843, %v865
    %v868 = vpack.c.bf16 %v866, %v866
    %v869 = vpack.c.bf16 %v867, %v867
    %v870 = vmul.f32 %v847, %v864
    %v871 = vmul.f32 %v849, %v865
    %v872 = vpack.c.bf16 %v871, %v870
    %873 = vrot.lane.b32.xlu0 %v173, 40
    %v874 = vpop.permute.xlu0 %873
    %v876 = vsel %vm176, %v868, 0
    %v879 = vsel %vm227, %v874, 0
    %881 = vmatpush.bf16.msra.mxu0 0
    %882 = vmatpush.bf16.msra.mxu0 0
    %883 = vmatpush.bf16.msra.mxu0 0
    %884 = vmatpush.bf16.msra.mxu0 0
    %885 = vmatpush.bf16.msra.mxu0 0
    %886 = vmatpush.bf16.msra.mxu0 0
    %887 = vmatpush.bf16.msra.mxu0 0
    %888 = vmatpush.bf16.msra.mxu0 %v879
    %889 = vmatmul.bf16.gmra.mxu0 %v876
    %v890 = vpop.f32.mrf.mxu0
    %v891 = vadd.f32 0.0, %v890
    %v892 = vpop.f32.mrf.mxu0
    %893 = vdwg.mxu0
    %894 = vrot.lane.b32.xlu0 %v198, 40
    %v895 = vpop.permute.xlu0 %894
    %v897 = vsel %vm176, %v869, 0
    %v900 = vsel %vm227, %v895, 0
    %902 = vmatpush.bf16.msra.mxu0 0
    %903 = vmatpush.bf16.msra.mxu0 0
    %904 = vmatpush.bf16.msra.mxu0 0
    %905 = vmatpush.bf16.msra.mxu0 0
    %906 = vmatpush.bf16.msra.mxu0 0
    %907 = vmatpush.bf16.msra.mxu0 0
    %908 = vmatpush.bf16.msra.mxu0 0
    %909 = vmatpush.bf16.msra.mxu0 %v900
    %910 = vmatmul.bf16.gmra.mxu0 %v897
    %v911 = vpop.f32.mrf.mxu0
    %v912 = vadd.f32 0.0, %v911
    %v913 = vpop.f32.mrf.mxu0
    %914 = vdwg.mxu0
    %s915 = scalar_lea.vmem %s6, 6
    %v916 = vld [vmem:[%s915] sm:$0x3]
    %v918 = vsel %vm255, %v872, 0
    %v921 = vsel %vm345, %v916, 0
    %923 = vmatpush.bf16.msra.mxu0 0
    %924 = vmatpush.bf16.msra.mxu0 0
    %925 = vmatpush.bf16.msra.mxu0 0
    %926 = vmatpush.bf16.msra.mxu0 0
    %927 = vmatpush.bf16.msra.mxu0 0
    %928 = vmatpush.bf16.msra.mxu0 0
    %929 = vmatpush.bf16.msra.mxu0 0
    %930 = vmatpush.bf16.msra.mxu0 %v921
    %931 = vmatmul.bf16.gmra.mxu0 %v918
    %v932 = vpop.f32.mrf.mxu0
    %v933 = vadd.f32 0.0, %v932
    %v934 = vpop.f32.mrf.mxu0
    %v935 = vadd.f32 0.0, %v934
    %936 = vdwg.mxu0
    %v937 = vadd.f32 %v891, %v933
    %v938 = vadd.f32 %v912, %v935
    %941 = vrot.lane.b32.xlu0 %v555, 8
    %v942 = vpop.permute.xlu0 %941
    %943 = vrot.lane.b32.xlu0 %v556, 8
    %v944 = vpop.permute.xlu0 %943
    %949 = vrot.lane.b32.xlu0 %v746, 16
    %v950 = vpop.permute.xlu0 %949
    %951 = vrot.lane.b32.xlu0 %v747, 16
    %v952 = vpop.permute.xlu0 %951
    %957 = vrot.lane.b32.xlu0 %v937, 24
    %v958 = vpop.permute.xlu0 %957
    %959 = vrot.lane.b32.xlu0 %v938, 24
    %v960 = vpop.permute.xlu0 %959
    %v963 = vsel %vm176, %v363, %v942
    %v964 = vsel %vm176, %v364, %v944
    %vm965 = vcmask 130048
    %v966 = vsel %vm965, %v963, %v950
    %v967 = vsel %vm965, %v964, %v952
    %vm968 = vcmask 195584
    %v969 = vsel %vm968, %v966, %v958
    %v970 = vsel %vm968, %v967, %v960
    %v971 = vpack.c.bf16 %v970, %v969
    %v972 = vld [vmem:[#allocation9] sm:$0xf]
    %v973 = vld [vmem:[#allocation9 + $0x4] sm:$0xf]
    %v974 = vld [vmem:[#allocation9 + $0x8] sm:$0xf]
    %v975 = vld [vmem:[#allocation9 + $0xc] sm:$0xf]
    %v980 = vunpack.c.l.b16 %v972
    %v981 = vunpack.c.l.b16 %v973
    %v982 = vunpack.c.l.b16 %v974
    %v983 = vunpack.c.l.b16 %v975
    %v984 = vpack.c.b16 %v981, %v980
    %v985 = vpack.c.b16 %v983, %v982
    %v989 = vsel %vm106, %v971, 0
    %991 = vmatpush.bf16.msra.mxu0 0
    %992 = vmatpush.bf16.msra.mxu0 0
    %993 = vmatpush.bf16.msra.mxu0 0
    %994 = vmatpush.bf16.msra.mxu0 0
    %995 = vmatpush.bf16.msra.mxu0 0
    %996 = vmatpush.bf16.msra.mxu0 0
    %997 = vmatpush.bf16.msra.mxu0 %v985
    %998 = vmatpush.bf16.msra.mxu0 %v984
    %999 = vmatmul.bf16.gmra.mxu0 %v989
    %v1000 = vpop.f32.mrf.mxu0
    %v1001 = vadd.f32 0.0, %v1000
    %v1002 = vpop.f32.mrf.mxu0
    %v1003 = vadd.f32 0.0, %v1002
    %1004 = vdwg.mxu0
    %v1005 = vadd.f32 %v85, %v1001
    %v1006 = vadd.f32 %v86, %v1003
    %v1007 = vsel %vm106, %v1005, 0.0
    %1008 = vadd.xlane.f32.xlu0 %v1007
    %v1009 = vpop.xlane.xlu0 %1008
    %v1010 = vsel %vm106, %v1006, 0.0
    %1011 = vadd.xlane.f32.xlu0 %v1010
    %v1012 = vpop.xlane.xlu0 %1011
    %v1013 = vrcp.pop 32.0
    %v1014 = vmul.f32 32.0, %v1013
    %v1015 = vsub.f32 1.0, %v1014
    %v1016 = vmul.f32 %v1013, %v1015
    %v1017 = vadd.f32 %v1013, %v1016
    %vm1018 = vweird.f32 %v1013
    %v1019 = vsel %vm1018, %v1013, %v1017
    %v1020 = vmul.f32 %v1009, %v1019
    %v1021 = vmul.f32 %v1012, %v1019
    %v1022 = vsub.f32 %v1005, %v1020
    %v1023 = vsub.f32 %v1006, %v1021
    %v1024 = vmul.f32 %v1022, %v1022
    %v1025 = vmul.f32 %v1023, %v1023
    %v1026 = vsel %vm106, %v1024, 0.0
    %1027 = vadd.xlane.f32.xlu0 %v1026
    %v1028 = vpop.xlane.xlu0 %1027
    %v1029 = vsel %vm106, %v1025, 0.0
    %1030 = vadd.xlane.f32.xlu0 %v1029
    %v1031 = vpop.xlane.xlu0 %1030
    %v1032 = vmul.f32 %v1028, %v1019
    %v1033 = vmul.f32 %v1031, %v1019
    %v1034 = vadd.f32 %v1032, 1e-05
    %v1035 = vadd.f32 %v1033, 1e-05
    %v1036 = vrsqrt.pop %v1034
    %v1037 = vmul.f32 %v1036, %v1034
    %v1038 = vmul.f32 %v1037, %v1036
    %v1039 = vmul.f32 0.5, %v1038
    %v1040 = vsub.f32 1.5, %v1039
    %v1041 = vmul.f32 %v1036, %v1040
    %vm1042 = vweird.f32 %v1034
    %vm1043 = vweird.f32 %v1036
    %vm1044 = vmor %vm1042, %vm1043
    %v1045 = vsel %vm1044, %v1036, %v1041
    %v1046 = vrsqrt.pop %v1035
    %v1047 = vmul.f32 %v1046, %v1035
    %v1048 = vmul.f32 %v1047, %v1046
    %v1049 = vmul.f32 0.5, %v1048
    %v1050 = vsub.f32 1.5, %v1049
    %v1051 = vmul.f32 %v1046, %v1050
    %vm1052 = vweird.f32 %v1035
    %vm1053 = vweird.f32 %v1046
    %vm1054 = vmor %vm1052, %vm1053
    %v1055 = vsel %vm1054, %v1046, %v1051
    %v1056 = vmul.f32 %v1022, %v1045
    %v1057 = vmul.f32 %v1023, %v1055
    %v1058 = vld [vmem:[%s7 + $0x1] sm:$0x1]
    %v1059 = vperm.slane %v1058, 0
    %v1060 = vmul.f32 %v1056, %v1059
    %v1061 = vmul.f32 %v1057, %v1059
    %v1062 = vld [vmem:[%s7 + $0x2] sm:$0x1]
    %v1063 = vperm.slane %v1062, 0
    %v1064 = vadd.f32 %v1060, %v1063
    %v1065 = vadd.f32 %v1061, %v1063
    %1066 = vst.msk [vmem:[#allocation10] sm:$0xff] %vm106, %v1064
    %1067 = vst.msk [vmem:[#allocation10 + $0x8] sm:$0xff] %vm106, %v1065
    // Predicated region
    $region42: #{tpu_custom_call.1} parent=1 // pred_check
      _
    $region43: #{tpu_custom_call.1} parent=1 // pred_check_branch
      %1069 = sbr.rel (0) target = $region45
    $region44: #{tpu_custom_call.1} parent=1 // pred_region
      %1071 = vsyncadd [#allocation6], 0
      %s1072 = sshll.u32 [#allocation10], 4
      %s1073 = int_to_ptr.vmem [resolvable:$true] %s1072
      %s1074 = sshll.u32 %s8, 4
      %s1075 = int_to_ptr.hbm [resolvable:$true] %s1074
      %1080 = dma.vmem_to_hbm [thread:$0]  %s1073, 256, %s1075, [#allocation6], 128, 128, 8
    $region45: #{tpu_custom_call.1} parent=1 // pred_fallthru
      _
    // Predicated region
    $region46: #{tpu_custom_call.1} parent=1 // pred_check
      _
    $region47: #{tpu_custom_call.1} parent=1 // pred_check_branch
      %1082 = sbr.rel (0) target = $region49
    $region48: #{tpu_custom_call.1} parent=1 // pred_region
      %1084 = dma.done [#allocation6], 256
    $region49: #{tpu_custom_call.1} parent=1 // pred_fallthru
      _
    %1085 = vsyncpa [#allocation5], 1
    %1086 = vsyncpa [#allocation8], 1
    %1087 = vsyncpa [#allocation6], 1

</llo_original>
